<compile_context>
chip_gen: v7x
topology: tpu7x:2x2x1
jax: 0.10.0
libtpu: 0.0.40
codegen_flags: <defaults>
</compile_context>

<pallas_src>
import jax
import jax.numpy as jnp
from jax.experimental import pallas as pl
from jax.experimental.pallas import tpu as pltpu


# ----------------------------- Pallas kernel --------------------------------

def _fused_pool_warp_kernel(x_ref, ph_ref, pwt_ref, st_ref, o_ref, pooled_acc):
    # x_ref      : (Cp, tH, W) f32   pixel rows for this K step (image + mask channels)
    # ph_ref     : (oh, tH)    f32   block of the H-pooling matrix
    # pwt_ref    : (W, ow)     f32   W-pooling matrix (transposed), resident
    # st_ref     : (oh, ow, nA*P)    per-augmentation S^T, reshaped so no in-kernel
    #                                reshape of the accumulator is needed (resident)
    # o_ref      : (Cp, N*P)         lane-dense output (resident across K steps)
    # pooled_acc : (Cp, oh, ow) f32  VMEM accumulator holding the pooled image+mask
    k = pl.program_id(0)
    cp = x_ref.shape[0]
    oh = pooled_acc.shape[1]
    ow = pooled_acc.shape[2]

    @pl.when(k == 0)
    def _():
        pooled_acc[...] = jnp.zeros_like(pooled_acc)

    # Separable adaptive-avg-pool, accumulated over H row-blocks.
    ph_blk = ph_ref[...]     # (oh, tH)
    pwt_blk = pwt_ref[...]   # (W, ow)
    for c in range(cp):      # Cp is small & static -> unrolled; stage-1 M dim is tH
        t1 = jnp.dot(x_ref[c], pwt_blk, preferred_element_type=jnp.float32)       # (tH, ow)
        pooled_acc[c] += jnp.dot(ph_blk, t1, preferred_element_type=jnp.float32)   # (oh, ow)

    @pl.when(k == pl.num_programs(0) - 1)
    def _():
        n_aug_cols = st_ref.shape[2]                 # nA * P
        n_orig_cols = o_ref.shape[1] - n_aug_cols    # P if with_orig else 0 (static)
        warp = jnp.zeros((cp, n_aug_cols), dtype=jnp.float32)
        for i in range(oh):                          # unrolled over output rows
            row = pooled_acc[:, i, :]                # (Cp, ow) f32
            if n_orig_cols:
                # with_orig: slot 0 = exact pooled original, written directly (no
                # identity matmul, stays exact even though the warp path is bf16).
                o_ref[:, i * ow:(i + 1) * ow] = row.astype(o_ref.dtype)
            warp = warp + jnp.dot(row.astype(st_ref.dtype), st_ref[i],
                                  preferred_element_type=jnp.float32)
        o_ref[:, n_orig_cols:] = warp.astype(o_ref.dtype)


def _choose_h_tile(h, w, cp, max_block_bytes=8 << 20):
    """Rows streamed per K step. Whole H if it fits (single-step launch for small
    inputs); otherwise a multiple-of-128 row tile (keeps the ph block's minor dim
    lane-aligned) with H zero-padded to a multiple of the tile (exact)."""
    if cp * h * w * 4 <= max_block_bytes:
        return h, h
    t_h = max(128, (max_block_bytes // (cp * w * 4)) // 128 * 128)
    h_pad = ((h + t_h - 1) // t_h) * t_h
    return t_h, h_pad


def _fused_pool_warp(x, ph, pwt, st3, n_total, t_h):
    cp, h_pad, w = x.shape
    oh = ph.shape[0]
    ow = pwt.shape[1]
    p = oh * ow
    n_aug_cols = st3.shape[2]
    nk = h_pad // t_h

    est = (2 * cp * t_h * w * 4          # x blocks (double buffered)
           + 2 * oh * t_h * 4            # ph blocks
           + 2 * w * ow * 4              # pw
           + 2 * st3.size * st3.dtype.itemsize
           + 2 * cp * n_total * p * 4    # output
           + cp * oh * ow * 4            # accumulator
           + cp * t_h * ow * 4)          # stage-1 intermediate
    vmem_limit = int(min(max(2 * est, 32 << 20), 64 << 20))

    return pl.pallas_call(
        _fused_pool_warp_kernel,
        out_shape=jax.ShapeDtypeStruct((cp, n_total * p), jnp.float32),
        grid_spec=pltpu.PrefetchScalarGridSpec(
            num_scalar_prefetch=0,
            grid=(nk,),
            in_specs=[
                pl.BlockSpec((cp, t_h, w), lambda k: (0, k, 0)),
                pl.BlockSpec((oh, t_h), lambda k: (0, k)),
                pl.BlockSpec((w, ow), lambda k: (0, 0)),          # resident
                pl.BlockSpec((oh, ow, n_aug_cols), lambda k: (0, 0, 0)),  # resident
            ],
            out_specs=pl.BlockSpec((cp, n_total * p), lambda k: (0, 0)),
            scratch_shapes=[pltpu.VMEM((cp, oh, ow), jnp.float32)],
        ),
        compiler_params=pltpu.CompilerParams(
            dimension_semantics=("arbitrary",),    # K (H rows) is a reduction axis
            vmem_limit_bytes=vmem_limit,
        ),
    )(x, ph, pwt, st3)


# ------------------------------ glue (plain JAX) -----------------------------

def _adaptive_pool_matrix(in_size, out_size):
    """Row-stochastic matrix (out_size, in_size) reproducing AdaptiveAvgPool1d."""
    o = jnp.arange(out_size)
    starts = (o * in_size) // out_size
    ends = ((o + 1) * in_size + out_size - 1) // out_size  # ceil
    idx = jnp.arange(in_size)
    m = ((idx[None, :] >= starts[:, None]) & (idx[None, :] < ends[:, None])).astype(jnp.float32)
    return m / jnp.sum(m, axis=1, keepdims=True)


def _build_warp_matrices(key, n, oh, ow, degrees, translate, p):
    """Per-sample bilinear sampling matrices S[n, P, P] for RandomAffine
    (rotation +/- degrees about image center, translation +/- translate*size,
    applied with probability p, border padding)."""
    # TODO(synk): torch/kornia RNG cannot be reproduced; affine params are drawn
    # deterministically with jax.random instead.
    k1, k2, k3, k4 = jax.random.split(key, 4)
    angles = jax.random.uniform(k1, (n,), minval=-degrees, maxval=degrees) * (jnp.pi / 180.0)
    txs = jax.random.uniform(k2, (n,), minval=-translate, maxval=translate) * ow
    tys = jax.random.uniform(k3, (n,), minval=-translate, maxval=translate) * oh
    applied = jax.random.uniform(k4, (n,)) < p

    ys, xs = jnp.meshgrid(
        jnp.arange(oh, dtype=jnp.float32), jnp.arange(ow, dtype=jnp.float32), indexing="ij"
    )
    xs = xs.reshape(-1)
    ys = ys.reshape(-1)
    cx = (ow - 1) / 2.0
    cy = (oh - 1) / 2.0
    P = oh * ow
    eye = jnp.eye(P, dtype=jnp.float32)

    def one(angle, tx, ty, app):
        c = jnp.cos(angle)
        s = jnp.sin(angle)
        # inverse affine: src = R(-theta) @ (dst - t - center) + center
        xd = xs - tx - cx
        yd = ys - ty - cy
        sx = c * xd + s * yd + cx
        sy = -s * xd + c * yd + cy
        # padding_mode='border' -> clamp sample coords
        sx = jnp.clip(sx, 0.0, ow - 1.0)
        sy = jnp.clip(sy, 0.0, oh - 1.0)
        x0 = jnp.floor(sx)
        y0 = jnp.floor(sy)
        x1 = jnp.minimum(x0 + 1.0, ow - 1.0)
        y1 = jnp.minimum(y0 + 1.0, oh - 1.0)
        wx = sx - x0
        wy = sy - y0
        x0i, x1i = x0.astype(jnp.int32), x1.astype(jnp.int32)
        y0i, y1i = y0.astype(jnp.int32), y1.astype(jnp.int32)

        def onehot(yi, xi):
            return jax.nn.one_hot(yi * ow + xi, P, dtype=jnp.float32)

        S = (
            ((1.0 - wy) * (1.0 - wx))[:, None] * onehot(y0i, x0i)
            + ((1.0 - wy) * wx)[:, None] * onehot(y0i, x1i)
            + (wy * (1.0 - wx))[:, None] * onehot(y1i, x0i)
            + (wy * wx)[:, None] * onehot(y1i, x1i)
        )
        return jnp.where(app, S, eye)

    return jax.vmap(one)(angles, txs, tys, applied)


def image_augmentations_forward(
    image, mask, *, output_size, augmentations_number, p=0.7, with_orig=True, key=None
):
    """JAX/Pallas equivalent of ImageAugmentations.forward.

    image: [1, C, H, W] float32, mask: [1, 1, H, W] float32
    returns (images [N, C, oh, ow], masks [N, 1, oh, ow]) with N=augmentations_number.
    """
    assert image.shape[0] == 1 and mask.shape[0] == 1
    C = image.shape[1]
    H, W = image.shape[2], image.shape[3]
    oh = ow = output_size
    P = oh * ow
    Cp = C + 1
    N = augmentations_number
    n_aug = N - (1 if with_orig else 0)
    assert n_aug >= 1, "need at least one augmented slot"
    if key is None:
        key = jax.random.PRNGKey(0)

    # Channel-major layout; image & mask concatenated so the identical affine hits
    # both (matches the PyTorch module, which reuses trans_params for the mask).
    x = jnp.concatenate([image[0], mask[0]], axis=0).astype(jnp.float32)   # (Cp, H, W)

    # Separable adaptive-avg-pool matrices (tiny: (oh,H) and (W,ow)); kept f32 so the
    # pooled / with_orig outputs match AdaptiveAvgPool2d exactly.
    ph = _adaptive_pool_matrix(H, oh)        # (oh, H)
    pwt = _adaptive_pool_matrix(W, ow).T     # (W, ow)

    # K tiling over H rows; zero-pad H (zero pixel rows x zero ph columns -> exact).
    t_h, h_pad = _choose_h_tile(H, W, Cp)
    if h_pad != H:
        x = jnp.pad(x, ((0, 0), (0, h_pad - H), (0, 0)))
        ph = jnp.pad(ph, ((0, 0), (0, h_pad - H)))

    # Per-augmentation warp matrices S^T, concatenated along lanes and reshaped to
    # (oh, ow, n_aug*P) so the kernel never reshapes its accumulator. bf16 operands,
    # f32 accumulation (with_orig slot 0 bypasses this matmul entirely).
    S = _build_warp_matrices(key, n_aug, oh, ow, degrees=15.0, translate=0.1, p=p)
    st_all = jnp.transpose(S, (2, 0, 1)).reshape(P, n_aug * P)      # [q, n*P+r] = S[n]^T[q,r]
    st3 = st_all.reshape(oh, ow, n_aug * P).astype(jnp.bfloat16)

    out = _fused_pool_warp(x, ph, pwt, st3, N, t_h)                 # (Cp, N*P)  [Pallas]

    # Tiny (Cp*N*P elements) reshape/transpose back to NCHW.
    out = out.reshape(Cp, N, oh, ow).transpose(1, 0, 2, 3)          # (N, Cp, oh, ow)
    return out[:, :C], out[:, C:]


# ---------------------------------- main -------------------------------------

if __name__ == "__main__":
    key = jax.random.PRNGKey(0)
    k_img, k_mask, k_aug = jax.random.split(key, 3)

    C, H, W = 4, 16, 16
    output_size = 8
    augmentations_number = 4

    image = jax.random.normal(k_img, (1, C, H, W), dtype=jnp.float32)
    mask = (jax.random.uniform(k_mask, (1, 1, H, W)) > 0.5).astype(jnp.float32)

    imgs_out, masks_out = image_augmentations_forward(
        image,
        mask,
        output_size=output_size,
        augmentations_number=augmentations_number,
        p=0.7,
        with_orig=True,
        key=k_aug,
    )
    jax.block_until_ready((imgs_out, masks_out))

    assert imgs_out.shape == (augmentations_number, C, output_size, output_size)
    assert masks_out.shape == (augmentations_number, 1, output_size, output_size)

    # with_orig=True: slot 0 must equal the plain adaptive-avg-pooled inputs (exact,
    # since slot 0 is written straight from the f32 accumulator).
    ph = _adaptive_pool_matrix(H, output_size)
    pw = _adaptive_pool_matrix(W, output_size)
    ref_img = jnp.einsum("oh,chw,pw->cop", ph, image[0], pw)
    ref_msk = jnp.einsum("oh,chw,pw->cop", ph, mask[0], pw)
    assert jnp.allclose(imgs_out[0], ref_img, atol=1e-3, rtol=1e-3)
    assert jnp.allclose(masks_out[0], ref_msk, atol=1e-3, rtol=1e-3)
    assert bool(jnp.all(jnp.isfinite(imgs_out))) and bool(jnp.all(jnp.isfinite(masks_out)))

    print("KERNEL_OK")
</pallas_src>

<mosaic_0001>
module attributes {stable_mosaic.version = 11 : i64} {
  func.func @_fused_pool_warp_kernel(%arg0: i32, %arg1: memref<5x16x16xf32, #tpu.memory_space<vmem>>, %arg2: memref<8x16xf32, #tpu.memory_space<vmem>>, %arg3: memref<16x8xf32, #tpu.memory_space<vmem>>, %arg4: memref<8x8x192xbf16, #tpu.memory_space<vmem>>, %arg5: memref<5x256xf32, #tpu.memory_space<vmem>>, %arg6: memref<5x8x8xf32, #tpu.memory_space<vmem>>) attributes {dimension_semantics = [#tpu.dimension_semantics<arbitrary>], iteration_bounds = array<i64: 1>, scalar_prefetch = 0 : i64, scratch_operands = 1 : i64, tpu.core_type = #tpu.core_type<tc>, window_params = [{transform_indices = @transform_0, window_bounds = array<i64: 5, 16, 16>}, {transform_indices = @transform_1, window_bounds = array<i64: 8, 16>}, {pipeline_mode = #tpu.pipeline_mode<synchronous>, transform_indices = @transform_2, window_bounds = array<i64: 16, 8>}, {pipeline_mode = #tpu.pipeline_mode<synchronous>, transform_indices = @transform_3, window_bounds = array<i64: 8, 8, 192>}, {pipeline_mode = #tpu.pipeline_mode<synchronous>, transform_indices = @transform_4, window_bounds = array<i64: 5, 256>}]} {
    %c0_i32 = arith.constant 0 : i32
    %0 = arith.cmpi eq, %arg0, %c0_i32 : i32
    %1 = arith.extui %0 : i1 to i32
    %c0_i32_0 = arith.constant 0 : i32
    %2 = arith.cmpi ne, %1, %c0_i32_0 : i32
    scf.if %2 {
      %cst_56 = arith.constant 0.000000e+00 : f32
      %58 = vector.broadcast %cst_56 : f32 to vector<5x8x8xf32>
      %c0_57 = arith.constant 0 : index
      %c0_58 = arith.constant 0 : index
      %c0_59 = arith.constant 0 : index
      %59 = vector.load %arg6[%c0_57, %c0_58, %c0_59] : memref<5x8x8xf32, #tpu.memory_space<vmem>>, vector<5x8x8xf32>
      tpu.vector_store %arg6[%c0_57, %c0_58, %c0_59], %58 {strides = array<i32>} : memref<5x8x8xf32, #tpu.memory_space<vmem>>, vector<5x8x8xf32>,
    } else {
    }
    %c0 = arith.constant 0 : index
    %c0_1 = arith.constant 0 : index
    %3 = vector.load %arg2[%c0, %c0_1] : memref<8x16xf32, #tpu.memory_space<vmem>>, vector<8x16xf32>
    %c0_2 = arith.constant 0 : index
    %c0_3 = arith.constant 0 : index
    %4 = vector.load %arg3[%c0_2, %c0_3] : memref<16x8xf32, #tpu.memory_space<vmem>>, vector<16x8xf32>
    %c0_4 = arith.constant 0 : index
    %c0_5 = arith.constant 0 : index
    %c0_6 = arith.constant 0 : index
    %5 = vector.load %arg1[%c0_4, %c0_5, %c0_6] : memref<5x16x16xf32, #tpu.memory_space<vmem>>, vector<1x16x16xf32>
    %6 = vector.shape_cast %5 : vector<1x16x16xf32> to vector<16x16xf32>
    %cst = arith.constant dense<0.000000e+00> : vector<16x8xf32>
    %7 = tpu.matmul %6, %4, %cst {dimension_numbers = #tpu.dot_dimension_numbers<[1], [0], [0], [1], [0, 0, 1, 1], [], []>} : vector<16x16xf32>, vector<16x8xf32>, vector<16x8xf32> -> vector<16x8xf32>
    %c0_7 = arith.constant 0 : index
    %c0_8 = arith.constant 0 : index
    %c0_9 = arith.constant 0 : index
    %8 = vector.load %arg6[%c0_7, %c0_8, %c0_9] : memref<5x8x8xf32, #tpu.memory_space<vmem>>, vector<1x8x8xf32>
    %9 = vector.shape_cast %8 : vector<1x8x8xf32> to vector<8x8xf32>
    %cst_10 = arith.constant dense<0.000000e+00> : vector<8x8xf32>
    %10 = tpu.matmul %3, %7, %cst_10 {dimension_numbers = #tpu.dot_dimension_numbers<[1], [0], [0], [1], [0, 0, 1, 1], [], []>} : vector<8x16xf32>, vector<16x8xf32>, vector<8x8xf32> -> vector<8x8xf32>
    %11 = arith.addf %9, %10 : vector<8x8xf32>
    %c0_11 = arith.constant 0 : index
    %c0_12 = arith.constant 0 : index
    %c0_13 = arith.constant 0 : index
    %12 = vector.load %arg6[%c0_11, %c0_12, %c0_13] : memref<5x8x8xf32, #tpu.memory_space<vmem>>, vector<1x8x8xf32>
    %13 = vector.shape_cast %12 : vector<1x8x8xf32> to vector<8x8xf32>
    %14 = vector.shape_cast %11 : vector<8x8xf32> to vector<1x8x8xf32>
    tpu.vector_store %arg6[%c0_11, %c0_12, %c0_13], %14 {strides = array<i32>} : memref<5x8x8xf32, #tpu.memory_space<vmem>>, vector<1x8x8xf32>,
    %c1 = arith.constant 1 : index
    %c0_14 = arith.constant 0 : index
    %c0_15 = arith.constant 0 : index
    %15 = vector.load %arg1[%c1, %c0_14, %c0_15] : memref<5x16x16xf32, #tpu.memory_space<vmem>>, vector<1x16x16xf32>
    %16 = vector.shape_cast %15 : vector<1x16x16xf32> to vector<16x16xf32>
    %cst_16 = arith.constant dense<0.000000e+00> : vector<16x8xf32>
    %17 = tpu.matmul %16, %4, %cst_16 {dimension_numbers = #tpu.dot_dimension_numbers<[1], [0], [0], [1], [0, 0, 1, 1], [], []>} : vector<16x16xf32>, vector<16x8xf32>, vector<16x8xf32> -> vector<16x8xf32>
    %c1_17 = arith.constant 1 : index
    %c0_18 = arith.constant 0 : index
    %c0_19 = arith.constant 0 : index
    %18 = vector.load %arg6[%c1_17, %c0_18, %c0_19] : memref<5x8x8xf32, #tpu.memory_space<vmem>>, vector<1x8x8xf32>
    %19 = vector.shape_cast %18 : vector<1x8x8xf32> to vector<8x8xf32>
    %cst_20 = arith.constant dense<0.000000e+00> : vector<8x8xf32>
    %20 = tpu.matmul %3, %17, %cst_20 {dimension_numbers = #tpu.dot_dimension_numbers<[1], [0], [0], [1], [0, 0, 1, 1], [], []>} : vector<8x16xf32>, vector<16x8xf32>, vector<8x8xf32> -> vector<8x8xf32>
    %21 = arith.addf %19, %20 : vector<8x8xf32>
    %c1_21 = arith.constant 1 : index
    %c0_22 = arith.constant 0 : index
    %c0_23 = arith.constant 0 : index
    %22 = vector.load %arg6[%c1_21, %c0_22, %c0_23] : memref<5x8x8xf32, #tpu.memory_space<vmem>>, vector<1x8x8xf32>
    %23 = vector.shape_cast %22 : vector<1x8x8xf32> to vector<8x8xf32>
    %24 = vector.shape_cast %21 : vector<8x8xf32> to vector<1x8x8xf32>
    tpu.vector_store %arg6[%c1_21, %c0_22, %c0_23], %24 {strides = array<i32>} : memref<5x8x8xf32, #tpu.memory_space<vmem>>, vector<1x8x8xf32>,
    %c2 = arith.constant 2 : index
    %c0_24 = arith.constant 0 : index
    %c0_25 = arith.constant 0 : index
    %25 = vector.load %arg1[%c2, %c0_24, %c0_25] : memref<5x16x16xf32, #tpu.memory_space<vmem>>, vector<1x16x16xf32>
    %26 = vector.shape_cast %25 : vector<1x16x16xf32> to vector<16x16xf32>
    %cst_26 = arith.constant dense<0.000000e+00> : vector<16x8xf32>
    %27 = tpu.matmul %26, %4, %cst_26 {dimension_numbers = #tpu.dot_dimension_numbers<[1], [0], [0], [1], [0, 0, 1, 1], [], []>} : vector<16x16xf32>, vector<16x8xf32>, vector<16x8xf32> -> vector<16x8xf32>
    %c2_27 = arith.constant 2 : index
    %c0_28 = arith.constant 0 : index
    %c0_29 = arith.constant 0 : index
    %28 = vector.load %arg6[%c2_27, %c0_28, %c0_29] : memref<5x8x8xf32, #tpu.memory_space<vmem>>, vector<1x8x8xf32>
    %29 = vector.shape_cast %28 : vector<1x8x8xf32> to vector<8x8xf32>
    %cst_30 = arith.constant dense<0.000000e+00> : vector<8x8xf32>
    %30 = tpu.matmul %3, %27, %cst_30 {dimension_numbers = #tpu.dot_dimension_numbers<[1], [0], [0], [1], [0, 0, 1, 1], [], []>} : vector<8x16xf32>, vector<16x8xf32>, vector<8x8xf32> -> vector<8x8xf32>
    %31 = arith.addf %29, %30 : vector<8x8xf32>
    %c2_31 = arith.constant 2 : index
    %c0_32 = arith.constant 0 : index
    %c0_33 = arith.constant 0 : index
    %32 = vector.load %arg6[%c2_31, %c0_32, %c0_33] : memref<5x8x8xf32, #tpu.memory_space<vmem>>, vector<1x8x8xf32>
    %33 = vector.shape_cast %32 : vector<1x8x8xf32> to vector<8x8xf32>
    %34 = vector.shape_cast %31 : vector<8x8xf32> to vector<1x8x8xf32>
    tpu.vector_store %arg6[%c2_31, %c0_32, %c0_33], %34 {strides = array<i32>} : memref<5x8x8xf32, #tpu.memory_space<vmem>>, vector<1x8x8xf32>,
    %c3 = arith.constant 3 : index
    %c0_34 = arith.constant 0 : index
    %c0_35 = arith.constant 0 : index
    %35 = vector.load %arg1[%c3, %c0_34, %c0_35] : memref<5x16x16xf32, #tpu.memory_space<vmem>>, vector<1x16x16xf32>
    %36 = vector.shape_cast %35 : vector<1x16x16xf32> to vector<16x16xf32>
    %cst_36 = arith.constant dense<0.000000e+00> : vector<16x8xf32>
    %37 = tpu.matmul %36, %4, %cst_36 {dimension_numbers = #tpu.dot_dimension_numbers<[1], [0], [0], [1], [0, 0, 1, 1], [], []>} : vector<16x16xf32>, vector<16x8xf32>, vector<16x8xf32> -> vector<16x8xf32>
    %c3_37 = arith.constant 3 : index
    %c0_38 = arith.constant 0 : index
    %c0_39 = arith.constant 0 : index
    %38 = vector.load %arg6[%c3_37, %c0_38, %c0_39] : memref<5x8x8xf32, #tpu.memory_space<vmem>>, vector<1x8x8xf32>
    %39 = vector.shape_cast %38 : vector<1x8x8xf32> to vector<8x8xf32>
    %cst_40 = arith.constant dense<0.000000e+00> : vector<8x8xf32>
    %40 = tpu.matmul %3, %37, %cst_40 {dimension_numbers = #tpu.dot_dimension_numbers<[1], [0], [0], [1], [0, 0, 1, 1], [], []>} : vector<8x16xf32>, vector<16x8xf32>, vector<8x8xf32> -> vector<8x8xf32>
    %41 = arith.addf %39, %40 : vector<8x8xf32>
    %c3_41 = arith.constant 3 : index
    %c0_42 = arith.constant 0 : index
    %c0_43 = arith.constant 0 : index
    %42 = vector.load %arg6[%c3_41, %c0_42, %c0_43] : memref<5x8x8xf32, #tpu.memory_space<vmem>>, vector<1x8x8xf32>
    %43 = vector.shape_cast %42 : vector<1x8x8xf32> to vector<8x8xf32>
    %44 = vector.shape_cast %41 : vector<8x8xf32> to vector<1x8x8xf32>
    tpu.vector_store %arg6[%c3_41, %c0_42, %c0_43], %44 {strides = array<i32>} : memref<5x8x8xf32, #tpu.memory_space<vmem>>, vector<1x8x8xf32>,
    %c4 = arith.constant 4 : index
    %c0_44 = arith.constant 0 : index
    %c0_45 = arith.constant 0 : index
    %45 = vector.load %arg1[%c4, %c0_44, %c0_45] : memref<5x16x16xf32, #tpu.memory_space<vmem>>, vector<1x16x16xf32>
    %46 = vector.shape_cast %45 : vector<1x16x16xf32> to vector<16x16xf32>
    %cst_46 = arith.constant dense<0.000000e+00> : vector<16x8xf32>
    %47 = tpu.matmul %46, %4, %cst_46 {dimension_numbers = #tpu.dot_dimension_numbers<[1], [0], [0], [1], [0, 0, 1, 1], [], []>} : vector<16x16xf32>, vector<16x8xf32>, vector<16x8xf32> -> vector<16x8xf32>
    %c4_47 = arith.constant 4 : index
    %c0_48 = arith.constant 0 : index
    %c0_49 = arith.constant 0 : index
    %48 = vector.load %arg6[%c4_47, %c0_48, %c0_49] : memref<5x8x8xf32, #tpu.memory_space<vmem>>, vector<1x8x8xf32>
    %49 = vector.shape_cast %48 : vector<1x8x8xf32> to vector<8x8xf32>
    %cst_50 = arith.constant dense<0.000000e+00> : vector<8x8xf32>
    %50 = tpu.matmul %3, %47, %cst_50 {dimension_numbers = #tpu.dot_dimension_numbers<[1], [0], [0], [1], [0, 0, 1, 1], [], []>} : vector<8x16xf32>, vector<16x8xf32>, vector<8x8xf32> -> vector<8x8xf32>
    %51 = arith.addf %49, %50 : vector<8x8xf32>
    %c4_51 = arith.constant 4 : index
    %c0_52 = arith.constant 0 : index
    %c0_53 = arith.constant 0 : index
    %52 = vector.load %arg6[%c4_51, %c0_52, %c0_53] : memref<5x8x8xf32, #tpu.memory_space<vmem>>, vector<1x8x8xf32>
    %53 = vector.shape_cast %52 : vector<1x8x8xf32> to vector<8x8xf32>
    %54 = vector.shape_cast %51 : vector<8x8xf32> to vector<1x8x8xf32>
    tpu.vector_store %arg6[%c4_51, %c0_52, %c0_53], %54 {strides = array<i32>} : memref<5x8x8xf32, #tpu.memory_space<vmem>>, vector<1x8x8xf32>,
    %c0_i32_54 = arith.constant 0 : i32
    %55 = arith.cmpi eq, %arg0, %c0_i32_54 : i32
    %56 = arith.extui %55 : i1 to i32
    %c0_i32_55 = arith.constant 0 : i32
    %57 = arith.cmpi ne, %56, %c0_i32_55 : i32
    scf.if %57 {
      %cst_56 = arith.constant 0.000000e+00 : f32
      %58 = vector.broadcast %cst_56 : f32 to vector<5x192xf32>
      %c0_57 = arith.constant 0 : index
      %c0_58 = arith.constant 0 : index
      %c0_59 = arith.constant 0 : index
      %59 = vector.load %arg6[%c0_57, %c0_58, %c0_59] : memref<5x8x8xf32, #tpu.memory_space<vmem>>, vector<5x1x8xf32>
      %60 = vector.shape_cast %59 : vector<5x1x8xf32> to vector<5x8xf32>
      %c0_60 = arith.constant 0 : index
      %c0_61 = arith.constant 0 : index
      %61 = vector.load %arg5[%c0_60, %c0_61] : memref<5x256xf32, #tpu.memory_space<vmem>>, vector<5x8xf32>
      tpu.vector_store %arg5[%c0_60, %c0_61], %60 {strides = array<i32>} : memref<5x256xf32, #tpu.memory_space<vmem>>, vector<5x8xf32>,
      %62 = arith.truncf %60 : vector<5x8xf32> to vector<5x8xbf16>
      %c0_62 = arith.constant 0 : index
      %c0_63 = arith.constant 0 : index
      %c0_64 = arith.constant 0 : index
      %63 = vector.load %arg4[%c0_62, %c0_63, %c0_64] : memref<8x8x192xbf16, #tpu.memory_space<vmem>>, vector<1x8x192xbf16>
      %64 = vector.shape_cast %63 : vector<1x8x192xbf16> to vector<8x192xbf16>
      %cst_65 = arith.constant dense<0.000000e+00> : vector<5x192xf32>
      %65 = tpu.matmul %62, %64, %cst_65 {dimension_numbers = #tpu.dot_dimension_numbers<[1], [0], [0], [1], [0, 0, 1, 1], [], []>} : vector<5x8xbf16>, vector<8x192xbf16>, vector<5x192xf32> -> vector<5x192xf32>
      %66 = arith.addf %58, %65 : vector<5x192xf32>
      %c0_66 = arith.constant 0 : index
      %c1_67 = arith.constant 1 : index
      %c0_68 = arith.constant 0 : index
      %67 = vector.load %arg6[%c0_66, %c1_67, %c0_68] : memref<5x8x8xf32, #tpu.memory_space<vmem>>, vector<5x1x8xf32>
      %68 = vector.shape_cast %67 : vector<5x1x8xf32> to vector<5x8xf32>
      %c0_69 = arith.constant 0 : index
      %c8 = arith.constant 8 : index
      %69 = vector.load %arg5[%c0_69, %c8] : memref<5x256xf32, #tpu.memory_space<vmem>>, vector<5x8xf32>
      tpu.vector_store %arg5[%c0_69, %c8], %68 {strides = array<i32>} : memref<5x256xf32, #tpu.memory_space<vmem>>, vector<5x8xf32>,
      %70 = arith.truncf %68 : vector<5x8xf32> to vector<5x8xbf16>
      %c1_70 = arith.constant 1 : index
      %c0_71 = arith.constant 0 : index
      %c0_72 = arith.constant 0 : index
      %71 = vector.load %arg4[%c1_70, %c0_71, %c0_72] : memref<8x8x192xbf16, #tpu.memory_space<vmem>>, vector<1x8x192xbf16>
      %72 = vector.shape_cast %71 : vector<1x8x192xbf16> to vector<8x192xbf16>
      %cst_73 = arith.constant dense<0.000000e+00> : vector<5x192xf32>
      %73 = tpu.matmul %70, %72, %cst_73 {dimension_numbers = #tpu.dot_dimension_numbers<[1], [0], [0], [1], [0, 0, 1, 1], [], []>} : vector<5x8xbf16>, vector<8x192xbf16>, vector<5x192xf32> -> vector<5x192xf32>
      %74 = arith.addf %66, %73 : vector<5x192xf32>
      %c0_74 = arith.constant 0 : index
      %c2_75 = arith.constant 2 : index
      %c0_76 = arith.constant 0 : index
      %75 = vector.load %arg6[%c0_74, %c2_75, %c0_76] : memref<5x8x8xf32, #tpu.memory_space<vmem>>, vector<5x1x8xf32>
      %76 = vector.shape_cast %75 : vector<5x1x8xf32> to vector<5x8xf32>
      %c0_77 = arith.constant 0 : index
      %c16 = arith.constant 16 : index
      %77 = vector.load %arg5[%c0_77, %c16] : memref<5x256xf32, #tpu.memory_space<vmem>>, vector<5x8xf32>
      tpu.vector_store %arg5[%c0_77, %c16], %76 {strides = array<i32>} : memref<5x256xf32, #tpu.memory_space<vmem>>, vector<5x8xf32>,
      %78 = arith.truncf %76 : vector<5x8xf32> to vector<5x8xbf16>
      %c2_78 = arith.constant 2 : index
      %c0_79 = arith.constant 0 : index
      %c0_80 = arith.constant 0 : index
      %79 = vector.load %arg4[%c2_78, %c0_79, %c0_80] : memref<8x8x192xbf16, #tpu.memory_space<vmem>>, vector<1x8x192xbf16>
      %80 = vector.shape_cast %79 : vector<1x8x192xbf16> to vector<8x192xbf16>
      %cst_81 = arith.constant dense<0.000000e+00> : vector<5x192xf32>
      %81 = tpu.matmul %78, %80, %cst_81 {dimension_numbers = #tpu.dot_dimension_numbers<[1], [0], [0], [1], [0, 0, 1, 1], [], []>} : vector<5x8xbf16>, vector<8x192xbf16>, vector<5x192xf32> -> vector<5x192xf32>
      %82 = arith.addf %74, %81 : vector<5x192xf32>
      %c0_82 = arith.constant 0 : index
      %c3_83 = arith.constant 3 : index
      %c0_84 = arith.constant 0 : index
      %83 = vector.load %arg6[%c0_82, %c3_83, %c0_84] : memref<5x8x8xf32, #tpu.memory_space<vmem>>, vector<5x1x8xf32>
      %84 = vector.shape_cast %83 : vector<5x1x8xf32> to vector<5x8xf32>
      %c0_85 = arith.constant 0 : index
      %c24 = arith.constant 24 : index
      %85 = vector.load %arg5[%c0_85, %c24] : memref<5x256xf32, #tpu.memory_space<vmem>>, vector<5x8xf32>
      tpu.vector_store %arg5[%c0_85, %c24], %84 {strides = array<i32>} : memref<5x256xf32, #tpu.memory_space<vmem>>, vector<5x8xf32>,
      %86 = arith.truncf %84 : vector<5x8xf32> to vector<5x8xbf16>
      %c3_86 = arith.constant 3 : index
      %c0_87 = arith.constant 0 : index
      %c0_88 = arith.constant 0 : index
      %87 = vector.load %arg4[%c3_86, %c0_87, %c0_88] : memref<8x8x192xbf16, #tpu.memory_space<vmem>>, vector<1x8x192xbf16>
      %88 = vector.shape_cast %87 : vector<1x8x192xbf16> to vector<8x192xbf16>
      %cst_89 = arith.constant dense<0.000000e+00> : vector<5x192xf32>
      %89 = tpu.matmul %86, %88, %cst_89 {dimension_numbers = #tpu.dot_dimension_numbers<[1], [0], [0], [1], [0, 0, 1, 1], [], []>} : vector<5x8xbf16>, vector<8x192xbf16>, vector<5x192xf32> -> vector<5x192xf32>
      %90 = arith.addf %82, %89 : vector<5x192xf32>
      %c0_90 = arith.constant 0 : index
      %c4_91 = arith.constant 4 : index
      %c0_92 = arith.constant 0 : index
      %91 = vector.load %arg6[%c0_90, %c4_91, %c0_92] : memref<5x8x8xf32, #tpu.memory_space<vmem>>, vector<5x1x8xf32>
      %92 = vector.shape_cast %91 : vector<5x1x8xf32> to vector<5x8xf32>
      %c0_93 = arith.constant 0 : index
      %c32 = arith.constant 32 : index
      %93 = vector.load %arg5[%c0_93, %c32] : memref<5x256xf32, #tpu.memory_space<vmem>>, vector<5x8xf32>
      tpu.vector_store %arg5[%c0_93, %c32], %92 {strides = array<i32>} : memref<5x256xf32, #tpu.memory_space<vmem>>, vector<5x8xf32>,
      %94 = arith.truncf %92 : vector<5x8xf32> to vector<5x8xbf16>
      %c4_94 = arith.constant 4 : index
      %c0_95 = arith.constant 0 : index
      %c0_96 = arith.constant 0 : index
      %95 = vector.load %arg4[%c4_94, %c0_95, %c0_96] : memref<8x8x192xbf16, #tpu.memory_space<vmem>>, vector<1x8x192xbf16>
      %96 = vector.shape_cast %95 : vector<1x8x192xbf16> to vector<8x192xbf16>
      %cst_97 = arith.constant dense<0.000000e+00> : vector<5x192xf32>
      %97 = tpu.matmul %94, %96, %cst_97 {dimension_numbers = #tpu.dot_dimension_numbers<[1], [0], [0], [1], [0, 0, 1, 1], [], []>} : vector<5x8xbf16>, vector<8x192xbf16>, vector<5x192xf32> -> vector<5x192xf32>
      %98 = arith.addf %90, %97 : vector<5x192xf32>
      %c0_98 = arith.constant 0 : index
      %c5 = arith.constant 5 : index
      %c0_99 = arith.constant 0 : index
      %99 = vector.load %arg6[%c0_98, %c5, %c0_99] : memref<5x8x8xf32, #tpu.memory_space<vmem>>, vector<5x1x8xf32>
      %100 = vector.shape_cast %99 : vector<5x1x8xf32> to vector<5x8xf32>
      %c0_100 = arith.constant 0 : index
      %c40 = arith.constant 40 : index
      %101 = vector.load %arg5[%c0_100, %c40] : memref<5x256xf32, #tpu.memory_space<vmem>>, vector<5x8xf32>
      tpu.vector_store %arg5[%c0_100, %c40], %100 {strides = array<i32>} : memref<5x256xf32, #tpu.memory_space<vmem>>, vector<5x8xf32>,
      %102 = arith.truncf %100 : vector<5x8xf32> to vector<5x8xbf16>
      %c5_101 = arith.constant 5 : index
      %c0_102 = arith.constant 0 : index
      %c0_103 = arith.constant 0 : index
      %103 = vector.load %arg4[%c5_101, %c0_102, %c0_103] : memref<8x8x192xbf16, #tpu.memory_space<vmem>>, vector<1x8x192xbf16>
      %104 = vector.shape_cast %103 : vector<1x8x192xbf16> to vector<8x192xbf16>
      %cst_104 = arith.constant dense<0.000000e+00> : vector<5x192xf32>
      %105 = tpu.matmul %102, %104, %cst_104 {dimension_numbers = #tpu.dot_dimension_numbers<[1], [0], [0], [1], [0, 0, 1, 1], [], []>} : vector<5x8xbf16>, vector<8x192xbf16>, vector<5x192xf32> -> vector<5x192xf32>
      %106 = arith.addf %98, %105 : vector<5x192xf32>
      %c0_105 = arith.constant 0 : index
      %c6 = arith.constant 6 : index
      %c0_106 = arith.constant 0 : index
      %107 = vector.load %arg6[%c0_105, %c6, %c0_106] : memref<5x8x8xf32, #tpu.memory_space<vmem>>, vector<5x1x8xf32>
      %108 = vector.shape_cast %107 : vector<5x1x8xf32> to vector<5x8xf32>
      %c0_107 = arith.constant 0 : index
      %c48 = arith.constant 48 : index
      %109 = vector.load %arg5[%c0_107, %c48] : memref<5x256xf32, #tpu.memory_space<vmem>>, vector<5x8xf32>
      tpu.vector_store %arg5[%c0_107, %c48], %108 {strides = array<i32>} : memref<5x256xf32, #tpu.memory_space<vmem>>, vector<5x8xf32>,
      %110 = arith.truncf %108 : vector<5x8xf32> to vector<5x8xbf16>
      %c6_108 = arith.constant 6 : index
      %c0_109 = arith.constant 0 : index
      %c0_110 = arith.constant 0 : index
      %111 = vector.load %arg4[%c6_108, %c0_109, %c0_110] : memref<8x8x192xbf16, #tpu.memory_space<vmem>>, vector<1x8x192xbf16>
      %112 = vector.shape_cast %111 : vector<1x8x192xbf16> to vector<8x192xbf16>
      %cst_111 = arith.constant dense<0.000000e+00> : vector<5x192xf32>
      %113 = tpu.matmul %110, %112, %cst_111 {dimension_numbers = #tpu.dot_dimension_numbers<[1], [0], [0], [1], [0, 0, 1, 1], [], []>} : vector<5x8xbf16>, vector<8x192xbf16>, vector<5x192xf32> -> vector<5x192xf32>
      %114 = arith.addf %106, %113 : vector<5x192xf32>
      %c0_112 = arith.constant 0 : index
      %c7 = arith.constant 7 : index
      %c0_113 = arith.constant 0 : index
      %115 = vector.load %arg6[%c0_112, %c7, %c0_113] : memref<5x8x8xf32, #tpu.memory_space<vmem>>, vector<5x1x8xf32>
      %116 = vector.shape_cast %115 : vector<5x1x8xf32> to vector<5x8xf32>
      %c0_114 = arith.constant 0 : index
      %c56 = arith.constant 56 : index
      %117 = vector.load %arg5[%c0_114, %c56] : memref<5x256xf32, #tpu.memory_space<vmem>>, vector<5x8xf32>
      tpu.vector_store %arg5[%c0_114, %c56], %116 {strides = array<i32>} : memref<5x256xf32, #tpu.memory_space<vmem>>, vector<5x8xf32>,
      %118 = arith.truncf %116 : vector<5x8xf32> to vector<5x8xbf16>
      %c7_115 = arith.constant 7 : index
      %c0_116 = arith.constant 0 : index
      %c0_117 = arith.constant 0 : index
      %119 = vector.load %arg4[%c7_115, %c0_116, %c0_117] : memref<8x8x192xbf16, #tpu.memory_space<vmem>>, vector<1x8x192xbf16>
      %120 = vector.shape_cast %119 : vector<1x8x192xbf16> to vector<8x192xbf16>
      %cst_118 = arith.constant dense<0.000000e+00> : vector<5x192xf32>
      %121 = tpu.matmul %118, %120, %cst_118 {dimension_numbers = #tpu.dot_dimension_numbers<[1], [0], [0], [1], [0, 0, 1, 1], [], []>} : vector<5x8xbf16>, vector<8x192xbf16>, vector<5x192xf32> -> vector<5x192xf32>
      %122 = arith.addf %114, %121 : vector<5x192xf32>
      %c0_119 = arith.constant 0 : index
      %c64 = arith.constant 64 : index
      %123 = vector.load %arg5[%c0_119, %c64] : memref<5x256xf32, #tpu.memory_space<vmem>>, vector<5x192xf32>
      tpu.vector_store %arg5[%c0_119, %c64], %122 {strides = array<i32>} : memref<5x256xf32, #tpu.memory_space<vmem>>, vector<5x192xf32>,
    } else {
    }
    return
  }
  func.func @transform_0(%arg0: i32) -> (i32, i32, i32) {
    %c0_i32 = arith.constant 0 : i32
    %c0_i32_0 = arith.constant 0 : i32
    %c0_i32_1 = arith.constant 0 : i32
    return %c0_i32, %arg0, %c0_i32_0 : i32, i32, i32
  }
  func.func @transform_1(%arg0: i32) -> (i32, i32) {
    %c0_i32 = arith.constant 0 : i32
    %c0_i32_0 = arith.constant 0 : i32
    return %c0_i32, %arg0 : i32, i32
  }
  func.func @transform_2(%arg0: i32) -> (i32, i32) {
    %c0_i32 = arith.constant 0 : i32
    %c0_i32_0 = arith.constant 0 : i32
    %c0_i32_1 = arith.constant 0 : i32
    return %c0_i32, %c0_i32_0 : i32, i32
  }
  func.func @transform_3(%arg0: i32) -> (i32, i32, i32) {
    %c0_i32 = arith.constant 0 : i32
    %c0_i32_0 = arith.constant 0 : i32
    %c0_i32_1 = arith.constant 0 : i32
    %c0_i32_2 = arith.constant 0 : i32
    return %c0_i32, %c0_i32_0, %c0_i32_1 : i32, i32, i32
  }
  func.func @transform_4(%arg0: i32) -> (i32, i32) {
    %c0_i32 = arith.constant 0 : i32
    %c0_i32_0 = arith.constant 0 : i32
    %c0_i32_1 = arith.constant 0 : i32
    return %c0_i32, %c0_i32_0 : i32, i32
  }
}

</mosaic_0001>

<llo_original>
// kernel: tpu_custom_call.1
$region0: #{tpu_custom_call.1}
  #allocation0 [shape = 'u32[]', space=smem, size = 0x4, offset = 0x4, fixed_abs, tag = 'smem constant byte address 0x4 - core index']
  #allocation1 [shape = 'u32[144,128]{1,0:T(1,128)}', space=vmem, size = 0x12000, scoped, tag = 'internal scratch']
  #allocation2 [shape = 'f32[5,8,8]{2,1,0:T(8,128)}', space=vmem, size = 0x5000, scoped, tag = 'scratch operand']
  %s0 = inlined_call_operand.hbm [shape: f32[5,16,16], index: 0, kind: input, shape index: {}]
  %s1 = inlined_call_operand.vmem [shape: f32[8,16], index: 1, kind: input, shape index: {}]
  %s2 = inlined_call_operand.vmem [shape: f32[16,8], index: 2, kind: input, shape index: {}]
  %s3 = inlined_call_operand.hbm [shape: bf16[8,8,192], index: 3, kind: input, shape index: {}]
  %s4 = inlined_call_operand.hbm [shape: f32[5,256], index: 4, kind: output, shape index: {}]
  %s5 = sld [smem:[#allocation0]]
  $region42: #{tpu_custom_call.1} parent=0
    _
  %s7 = ssub.s32 1, %s5
  %s8 = scalar_select 0, %s7, %s5
  $region1: #{tpu_custom_call.1} parent=0
    #allocation3 [shape = 'u8[40960]{0}', space=vmem, size = 0xa000, scoped, tag = 'input window, operand 0, single buffered']
    #allocation4 [shape = 's32[1]{0}', space=sflag, size = 0x4, scoped, tag = 'scoped memory for tpu_custom_call.1']
    #allocation5 [shape = 's32[1]{0}', space=sflag, size = 0x4, scoped, tag = 'scoped memory for tpu_custom_call.1']
    #allocation6 [shape = 'u8[32768]{0}', space=vmem, size = 0x8000, scoped, tag = 'input window, operand 3, single buffered']
    #allocation7 [shape = 's32[1]{0}', space=sflag, size = 0x4, scoped, tag = 'scoped memory for tpu_custom_call.1']
    #allocation8 [shape = 'u8[8192]{0}', space=vmem, size = 0x2000, scoped, tag = 'output window, operand 0, single buffered']
    %9 = vsyncpa [#allocation4], 0
    %10 = vsyncpa [#allocation7], 0
    %11 = vsyncpa [#allocation5], 0
    // Predicated region
    $region2: #{tpu_custom_call.1} parent=1 // pred_check
      _
    $region3: #{tpu_custom_call.1} parent=1 // pred_check_branch
      %13 = sbr.rel (0) target = $region5
    $region4: #{tpu_custom_call.1} parent=1 // pred_region
      %s15 = ssub.s32 1280, 1280
      %16 = vsyncadd [#allocation4], %s15
      %s17 = sshll.u32 [#allocation3], 4
      %s18 = int_to_ptr.vmem [resolvable:$true] %s17
      %23 = dma.hbm_to_vmem [thread:$0]  %s0, 1280, %s18, [#allocation4], 128, 128, 8
    $region5: #{tpu_custom_call.1} parent=1 // pred_fallthru
      _
    // Predicated region
    $region6: #{tpu_custom_call.1} parent=1 // pred_check
      _
    $region7: #{tpu_custom_call.1} parent=1 // pred_check_branch
      %25 = sbr.rel (0) target = $region9
    $region8: #{tpu_custom_call.1} parent=1 // pred_region
      _
    $region9: #{tpu_custom_call.1} parent=1 // pred_fallthru
      _
    // Predicated region
    $region10: #{tpu_custom_call.1} parent=1 // pred_check
      _
    $region11: #{tpu_custom_call.1} parent=1 // pred_check_branch
      %27 = sbr.rel (0) target = $region13
    $region12: #{tpu_custom_call.1} parent=1 // pred_region
      _
    $region13: #{tpu_custom_call.1} parent=1 // pred_fallthru
      _
    // Predicated region
    $region14: #{tpu_custom_call.1} parent=1 // pred_check
      _
    $region15: #{tpu_custom_call.1} parent=1 // pred_check_branch
      %29 = sbr.rel (0) target = $region17
    $region16: #{tpu_custom_call.1} parent=1 // pred_region
      %s31 = ssub.s32 1024, 1024
      %32 = vsyncadd [#allocation7], %s31
      %s33 = sshll.u32 [#allocation6], 4
      %s34 = int_to_ptr.vmem [resolvable:$true] %s33
      %39 = dma.hbm_to_vmem [thread:$0]  %s3, 1024, %s34, [#allocation7], 128, 128, 8
    $region17: #{tpu_custom_call.1} parent=1 // pred_fallthru
      _
    // Predicated region
    $region18: #{tpu_custom_call.1} parent=1 // pred_check
      _
    $region19: #{tpu_custom_call.1} parent=1 // pred_check_branch
      %41 = sbr.rel (0) target = $region21
    $region20: #{tpu_custom_call.1} parent=1 // pred_region
      %42 = dma.done [#allocation4], 1280
    $region21: #{tpu_custom_call.1} parent=1 // pred_fallthru
      _
    // Predicated region
    $region22: #{tpu_custom_call.1} parent=1 // pred_check
      _
    $region23: #{tpu_custom_call.1} parent=1 // pred_check_branch
      %44 = sbr.rel (0) target = $region25
    $region24: #{tpu_custom_call.1} parent=1 // pred_region
      %45 = dma.done [#allocation7], 1024
    $region25: #{tpu_custom_call.1} parent=1 // pred_fallthru
      _
    %p47 = scmp.eq.s32.totalorder 0, 0
    // Predicated region
    $region26: #{tpu_custom_call.1} parent=1 // pred_check
      %p48 = pneg %p47
    $region27: #{tpu_custom_call.1} parent=1 // pred_check_branch
      %50 = sbr.rel (%p48) target = $region29
    $region28: #{tpu_custom_call.1} parent=1 // pred_region
      %vm51 = vcmask 64512
      %52 = vst.msk [vmem:[#allocation2] sm:$0xff] %vm51, 0.0
      %53 = vst.msk [vmem:[#allocation2 + $0x8] sm:$0xff] %vm51, 0.0
      %54 = vst.msk [vmem:[#allocation2 + $0x10] sm:$0xff] %vm51, 0.0
      %55 = vst.msk [vmem:[#allocation2 + $0x18] sm:$0xff] %vm51, 0.0
      %56 = vst.msk [vmem:[#allocation2 + $0x20] sm:$0xff] %vm51, 0.0
    $region29: #{tpu_custom_call.1} parent=1 // pred_fallthru
      _
    %v57 = vld [vmem:[%s1] sm:$0xff]
    %v58 = vld [vmem:[%s2] sm:$0xff]
    %v59 = vld [vmem:[%s2 + $0x8] sm:$0xff]
    %v60 = vld [vmem:[#allocation3] sm:$0xff]
    %v61 = vld [vmem:[#allocation3 + $0x8] sm:$0xff]
    %vm62 = vcmask 130048
    %v64 = vsel %vm62, %v60, 0
    %v67 = vsel %vm62, %v61, 0
    %69 = vmatprep.subr.mxu0 0.0
    %70 = vmatpush1.msra.mxu0 %v58
    %71 = vmatprep.subr.mxu0 0.0
    %72 = vmatpush1.msra.mxu0 %v59
    %73 = vmatprep.subr.mxu0 0.0
    %74 = vmatpush1.msra.mxu0 0.0
    %75 = vmatprep.subr.mxu0 0.0
    %76 = vmatpush1.msra.mxu0 0.0
    %77 = vmatprep.subr.mxu0 0.0
    %78 = vmatpush1.msra.mxu0 0.0
    %79 = vmatprep.subr.mxu0 0.0
    %80 = vmatpush1.msra.mxu0 0.0
    %81 = vmatprep.subr.mxu0 0.0
    %82 = vmatpush1.msra.mxu0 0.0
    %83 = vmatprep.subr.mxu0 0.0
    %84 = vmatpush1.msra.mxu0 0.0
    %85 = vmatprep.subr.mxu0 0.0
    %86 = vmatpush1.msra.mxu0 0.0
    %87 = vmatprep.subr.mxu0 0.0
    %88 = vmatpush1.msra.mxu0 0.0
    %89 = vmatprep.subr.mxu0 0.0
    %90 = vmatpush1.msra.mxu0 0.0
    %91 = vmatprep.subr.mxu0 0.0
    %92 = vmatpush1.msra.mxu0 0.0
    %93 = vmatprep.subr.mxu0 0.0
    %94 = vmatpush1.msra.mxu0 0.0
    %95 = vmatprep.subr.mxu0 0.0
    %96 = vmatpush1.msra.mxu0 0.0
    %97 = vmatprep.subr.mxu0 0.0
    %98 = vmatpush1.msra.mxu0 0.0
    %99 = vmatprep.subr.mxu0 0.0
    %100 = vmatpush1.msra.mxu0 0.0
    %101 = vmatprep.subr.mxu0 0.0
    %102 = vmatpush1.msra.mxu0 0.0
    %103 = vmatprep.subr.mxu0 0.0
    %104 = vmatpush1.msra.mxu0 0.0
    %105 = vmatprep.subr.mxu0 0.0
    %106 = vmatpush1.msra.mxu0 0.0
    %107 = vmatprep.subr.mxu0 0.0
    %108 = vmatpush1.msra.mxu0 0.0
    %109 = vmatprep.subr.mxu0 0.0
    %110 = vmatpush1.msra.mxu0 0.0
    %111 = vmatprep.subr.mxu0 0.0
    %112 = vmatpush1.msra.mxu0 0.0
    %113 = vmatprep.subr.mxu0 0.0
    %114 = vmatpush1.msra.mxu0 0.0
    %115 = vmatprep.subr.mxu0 0.0
    %116 = vmatpush1.msra.mxu0 0.0
    %117 = vmatprep.subr.mxu0 0.0
    %118 = vmatpush1.msra.mxu0 0.0
    %119 = vmatprep.subr.mxu0 0.0
    %120 = vmatpush1.msra.mxu0 0.0
    %121 = vmatprep.subr.mxu0 0.0
    %122 = vmatpush1.msra.mxu0 0.0
    %123 = vmatprep.subr.mxu0 0.0
    %124 = vmatpush1.msra.mxu0 0.0
    %125 = vmatprep.subr.mxu0 0.0
    %126 = vmatpush1.msra.mxu0 0.0
    %127 = vmatprep.subr.mxu0 0.0
    %128 = vmatpush1.msra.mxu0 0.0
    %129 = vmatprep.subr.mxu0 0.0
    %130 = vmatpush1.msra.mxu0 0.0
    %131 = vmatprep.subr.mxu0 0.0
    %132 = vmatpush1.msra.mxu0 0.0
    %133 = vmatprep.mubr.f32.mxu0 0.0
    %134 = vmatmul.mubr.f32.gmra.mrb[0].mxu0 %v64
    %v135 = vpop.f32.mrb[0].mxu0
    %v136 = vadd.f32 0.0, %v135
    %v137 = vpop.f32.mrb[0].mxu0
    %138 = vmatprep.mubr.f32.mxu0 0.0
    %139 = vmatmul.mubr.f32.gmra.mrb[0].mxu0 %v67
    %v140 = vpop.f32.mrb[0].mxu0
    %v141 = vadd.f32 0.0, %v140
    %v142 = vpop.f32.mrb[0].mxu0
    %143 = vdwg.mxu0
    %v144 = vld [vmem:[#allocation2] sm:$0xff]
    %v146 = vsel %vm62, %v57, 0
    %148 = vmatprep.subr.mxu0 0.0
    %149 = vmatpush1.msra.mxu0 %v136
    %150 = vmatprep.subr.mxu0 0.0
    %151 = vmatpush1.msra.mxu0 %v141
    %152 = vmatprep.subr.mxu0 0.0
    %153 = vmatpush1.msra.mxu0 0.0
    %154 = vmatprep.subr.mxu0 0.0
    %155 = vmatpush1.msra.mxu0 0.0
    %156 = vmatprep.subr.mxu0 0.0
    %157 = vmatpush1.msra.mxu0 0.0
    %158 = vmatprep.subr.mxu0 0.0
    %159 = vmatpush1.msra.mxu0 0.0
    %160 = vmatprep.subr.mxu0 0.0
    %161 = vmatpush1.msra.mxu0 0.0
    %162 = vmatprep.subr.mxu0 0.0
    %163 = vmatpush1.msra.mxu0 0.0
    %164 = vmatprep.subr.mxu0 0.0
    %165 = vmatpush1.msra.mxu0 0.0
    %166 = vmatprep.subr.mxu0 0.0
    %167 = vmatpush1.msra.mxu0 0.0
    %168 = vmatprep.subr.mxu0 0.0
    %169 = vmatpush1.msra.mxu0 0.0
    %170 = vmatprep.subr.mxu0 0.0
    %171 = vmatpush1.msra.mxu0 0.0
    %172 = vmatprep.subr.mxu0 0.0
    %173 = vmatpush1.msra.mxu0 0.0
    %174 = vmatprep.subr.mxu0 0.0
    %175 = vmatpush1.msra.mxu0 0.0
    %176 = vmatprep.subr.mxu0 0.0
    %177 = vmatpush1.msra.mxu0 0.0
    %178 = vmatprep.subr.mxu0 0.0
    %179 = vmatpush1.msra.mxu0 0.0
    %180 = vmatprep.subr.mxu0 0.0
    %181 = vmatpush1.msra.mxu0 0.0
    %182 = vmatprep.subr.mxu0 0.0
    %183 = vmatpush1.msra.mxu0 0.0
    %184 = vmatprep.subr.mxu0 0.0
    %185 = vmatpush1.msra.mxu0 0.0
    %186 = vmatprep.subr.mxu0 0.0
    %187 = vmatpush1.msra.mxu0 0.0
    %188 = vmatprep.subr.mxu0 0.0
    %189 = vmatpush1.msra.mxu0 0.0
    %190 = vmatprep.subr.mxu0 0.0
    %191 = vmatpush1.msra.mxu0 0.0
    %192 = vmatprep.subr.mxu0 0.0
    %193 = vmatpush1.msra.mxu0 0.0
    %194 = vmatprep.subr.mxu0 0.0
    %195 = vmatpush1.msra.mxu0 0.0
    %196 = vmatprep.subr.mxu0 0.0
    %197 = vmatpush1.msra.mxu0 0.0
    %198 = vmatprep.subr.mxu0 0.0
    %199 = vmatpush1.msra.mxu0 0.0
    %200 = vmatprep.subr.mxu0 0.0
    %201 = vmatpush1.msra.mxu0 0.0
    %202 = vmatprep.subr.mxu0 0.0
    %203 = vmatpush1.msra.mxu0 0.0
    %204 = vmatprep.subr.mxu0 0.0
    %205 = vmatpush1.msra.mxu0 0.0
    %206 = vmatprep.subr.mxu0 0.0
    %207 = vmatpush1.msra.mxu0 0.0
    %208 = vmatprep.subr.mxu0 0.0
    %209 = vmatpush1.msra.mxu0 0.0
    %210 = vmatprep.subr.mxu0 0.0
    %211 = vmatpush1.msra.mxu0 0.0
    %212 = vmatprep.mubr.f32.mxu0 0.0
    %213 = vmatmul.mubr.f32.gmra.mrb[0].mxu0 %v146
    %v214 = vpop.f32.mrb[0].mxu0
    %v215 = vadd.f32 0.0, %v214
    %v216 = vpop.f32.mrb[0].mxu0
    %217 = vdwg.mxu0
    %v218 = vadd.f32 %v144, %v215
    %vm219 = vcmask 64512
    %220 = vst.msk [vmem:[#allocation2] sm:$0xff] %vm219, %v218
    %s221 = scalar_lea.vmem [#allocation3], 16
    %v222 = vld [vmem:[%s221] sm:$0xff]
    %v223 = vld [vmem:[%s221 + $0x8] sm:$0xff]
    %v225 = vsel %vm62, %v222, 0
    %v228 = vsel %vm62, %v223, 0
    %230 = vmatprep.subr.mxu0 0.0
    %231 = vmatpush1.msra.mxu0 %v58
    %232 = vmatprep.subr.mxu0 0.0
    %233 = vmatpush1.msra.mxu0 %v59
    %234 = vmatprep.subr.mxu0 0.0
    %235 = vmatpush1.msra.mxu0 0.0
    %236 = vmatprep.subr.mxu0 0.0
    %237 = vmatpush1.msra.mxu0 0.0
    %238 = vmatprep.subr.mxu0 0.0
    %239 = vmatpush1.msra.mxu0 0.0
    %240 = vmatprep.subr.mxu0 0.0
    %241 = vmatpush1.msra.mxu0 0.0
    %242 = vmatprep.subr.mxu0 0.0
    %243 = vmatpush1.msra.mxu0 0.0
    %244 = vmatprep.subr.mxu0 0.0
    %245 = vmatpush1.msra.mxu0 0.0
    %246 = vmatprep.subr.mxu0 0.0
    %247 = vmatpush1.msra.mxu0 0.0
    %248 = vmatprep.subr.mxu0 0.0
    %249 = vmatpush1.msra.mxu0 0.0
    %250 = vmatprep.subr.mxu0 0.0
    %251 = vmatpush1.msra.mxu0 0.0
    %252 = vmatprep.subr.mxu0 0.0
    %253 = vmatpush1.msra.mxu0 0.0
    %254 = vmatprep.subr.mxu0 0.0
    %255 = vmatpush1.msra.mxu0 0.0
    %256 = vmatprep.subr.mxu0 0.0
    %257 = vmatpush1.msra.mxu0 0.0
    %258 = vmatprep.subr.mxu0 0.0
    %259 = vmatpush1.msra.mxu0 0.0
    %260 = vmatprep.subr.mxu0 0.0
    %261 = vmatpush1.msra.mxu0 0.0
    %262 = vmatprep.subr.mxu0 0.0
    %263 = vmatpush1.msra.mxu0 0.0
    %264 = vmatprep.subr.mxu0 0.0
    %265 = vmatpush1.msra.mxu0 0.0
    %266 = vmatprep.subr.mxu0 0.0
    %267 = vmatpush1.msra.mxu0 0.0
    %268 = vmatprep.subr.mxu0 0.0
    %269 = vmatpush1.msra.mxu0 0.0
    %270 = vmatprep.subr.mxu0 0.0
    %271 = vmatpush1.msra.mxu0 0.0
    %272 = vmatprep.subr.mxu0 0.0
    %273 = vmatpush1.msra.mxu0 0.0
    %274 = vmatprep.subr.mxu0 0.0
    %275 = vmatpush1.msra.mxu0 0.0
    %276 = vmatprep.subr.mxu0 0.0
    %277 = vmatpush1.msra.mxu0 0.0
    %278 = vmatprep.subr.mxu0 0.0
    %279 = vmatpush1.msra.mxu0 0.0
    %280 = vmatprep.subr.mxu0 0.0
    %281 = vmatpush1.msra.mxu0 0.0
    %282 = vmatprep.subr.mxu0 0.0
    %283 = vmatpush1.msra.mxu0 0.0
    %284 = vmatprep.subr.mxu0 0.0
    %285 = vmatpush1.msra.mxu0 0.0
    %286 = vmatprep.subr.mxu0 0.0
    %287 = vmatpush1.msra.mxu0 0.0
    %288 = vmatprep.subr.mxu0 0.0
    %289 = vmatpush1.msra.mxu0 0.0
    %290 = vmatprep.subr.mxu0 0.0
    %291 = vmatpush1.msra.mxu0 0.0
    %292 = vmatprep.subr.mxu0 0.0
    %293 = vmatpush1.msra.mxu0 0.0
    %294 = vmatprep.mubr.f32.mxu0 0.0
    %295 = vmatmul.mubr.f32.gmra.mrb[0].mxu0 %v225
    %v296 = vpop.f32.mrb[0].mxu0
    %v297 = vadd.f32 0.0, %v296
    %v298 = vpop.f32.mrb[0].mxu0
    %299 = vmatprep.mubr.f32.mxu0 0.0
    %300 = vmatmul.mubr.f32.gmra.mrb[0].mxu0 %v228
    %v301 = vpop.f32.mrb[0].mxu0
    %v302 = vadd.f32 0.0, %v301
    %v303 = vpop.f32.mrb[0].mxu0
    %304 = vdwg.mxu0
    %s305 = scalar_lea.vmem [#allocation2], 8
    %v306 = vld [vmem:[%s305] sm:$0xff]
    %307 = vmatprep.subr.mxu0 0.0
    %308 = vmatpush1.msra.mxu0 %v297
    %309 = vmatprep.subr.mxu0 0.0
    %310 = vmatpush1.msra.mxu0 %v302
    %311 = vmatprep.subr.mxu0 0.0
    %312 = vmatpush1.msra.mxu0 0.0
    %313 = vmatprep.subr.mxu0 0.0
    %314 = vmatpush1.msra.mxu0 0.0
    %315 = vmatprep.subr.mxu0 0.0
    %316 = vmatpush1.msra.mxu0 0.0
    %317 = vmatprep.subr.mxu0 0.0
    %318 = vmatpush1.msra.mxu0 0.0
    %319 = vmatprep.subr.mxu0 0.0
    %320 = vmatpush1.msra.mxu0 0.0
    %321 = vmatprep.subr.mxu0 0.0
    %322 = vmatpush1.msra.mxu0 0.0
    %323 = vmatprep.subr.mxu0 0.0
    %324 = vmatpush1.msra.mxu0 0.0
    %325 = vmatprep.subr.mxu0 0.0
    %326 = vmatpush1.msra.mxu0 0.0
    %327 = vmatprep.subr.mxu0 0.0
    %328 = vmatpush1.msra.mxu0 0.0
    %329 = vmatprep.subr.mxu0 0.0
    %330 = vmatpush1.msra.mxu0 0.0
    %331 = vmatprep.subr.mxu0 0.0
    %332 = vmatpush1.msra.mxu0 0.0
    %333 = vmatprep.subr.mxu0 0.0
    %334 = vmatpush1.msra.mxu0 0.0
    %335 = vmatprep.subr.mxu0 0.0
    %336 = vmatpush1.msra.mxu0 0.0
    %337 = vmatprep.subr.mxu0 0.0
    %338 = vmatpush1.msra.mxu0 0.0
    %339 = vmatprep.subr.mxu0 0.0
    %340 = vmatpush1.msra.mxu0 0.0
    %341 = vmatprep.subr.mxu0 0.0
    %342 = vmatpush1.msra.mxu0 0.0
    %343 = vmatprep.subr.mxu0 0.0
    %344 = vmatpush1.msra.mxu0 0.0
    %345 = vmatprep.subr.mxu0 0.0
    %346 = vmatpush1.msra.mxu0 0.0
    %347 = vmatprep.subr.mxu0 0.0
    %348 = vmatpush1.msra.mxu0 0.0
    %349 = vmatprep.subr.mxu0 0.0
    %350 = vmatpush1.msra.mxu0 0.0
    %351 = vmatprep.subr.mxu0 0.0
    %352 = vmatpush1.msra.mxu0 0.0
    %353 = vmatprep.subr.mxu0 0.0
    %354 = vmatpush1.msra.mxu0 0.0
    %355 = vmatprep.subr.mxu0 0.0
    %356 = vmatpush1.msra.mxu0 0.0
    %357 = vmatprep.subr.mxu0 0.0
    %358 = vmatpush1.msra.mxu0 0.0
    %359 = vmatprep.subr.mxu0 0.0
    %360 = vmatpush1.msra.mxu0 0.0
    %361 = vmatprep.subr.mxu0 0.0
    %362 = vmatpush1.msra.mxu0 0.0
    %363 = vmatprep.subr.mxu0 0.0
    %364 = vmatpush1.msra.mxu0 0.0
    %365 = vmatprep.subr.mxu0 0.0
    %366 = vmatpush1.msra.mxu0 0.0
    %367 = vmatprep.subr.mxu0 0.0
    %368 = vmatpush1.msra.mxu0 0.0
    %369 = vmatprep.subr.mxu0 0.0
    %370 = vmatpush1.msra.mxu0 0.0
    %371 = vmatprep.mubr.f32.mxu0 0.0
    %372 = vmatmul.mubr.f32.gmra.mrb[0].mxu0 %v146
    %v373 = vpop.f32.mrb[0].mxu0
    %v374 = vadd.f32 0.0, %v373
    %v375 = vpop.f32.mrb[0].mxu0
    %376 = vdwg.mxu0
    %v377 = vadd.f32 %v306, %v374
    %378 = vst.msk [vmem:[%s305] sm:$0xff] %vm219, %v377
    %s379 = scalar_lea.vmem [#allocation3], 32
    %v380 = vld [vmem:[%s379] sm:$0xff]
    %v381 = vld [vmem:[%s379 + $0x8] sm:$0xff]
    %v383 = vsel %vm62, %v380, 0
    %v386 = vsel %vm62, %v381, 0
    %388 = vmatprep.subr.mxu0 0.0
    %389 = vmatpush1.msra.mxu0 %v58
    %390 = vmatprep.subr.mxu0 0.0
    %391 = vmatpush1.msra.mxu0 %v59
    %392 = vmatprep.subr.mxu0 0.0
    %393 = vmatpush1.msra.mxu0 0.0
    %394 = vmatprep.subr.mxu0 0.0
    %395 = vmatpush1.msra.mxu0 0.0
    %396 = vmatprep.subr.mxu0 0.0
    %397 = vmatpush1.msra.mxu0 0.0
    %398 = vmatprep.subr.mxu0 0.0
    %399 = vmatpush1.msra.mxu0 0.0
    %400 = vmatprep.subr.mxu0 0.0
    %401 = vmatpush1.msra.mxu0 0.0
    %402 = vmatprep.subr.mxu0 0.0
    %403 = vmatpush1.msra.mxu0 0.0
    %404 = vmatprep.subr.mxu0 0.0
    %405 = vmatpush1.msra.mxu0 0.0
    %406 = vmatprep.subr.mxu0 0.0
    %407 = vmatpush1.msra.mxu0 0.0
    %408 = vmatprep.subr.mxu0 0.0
    %409 = vmatpush1.msra.mxu0 0.0
    %410 = vmatprep.subr.mxu0 0.0
    %411 = vmatpush1.msra.mxu0 0.0
    %412 = vmatprep.subr.mxu0 0.0
    %413 = vmatpush1.msra.mxu0 0.0
    %414 = vmatprep.subr.mxu0 0.0
    %415 = vmatpush1.msra.mxu0 0.0
    %416 = vmatprep.subr.mxu0 0.0
    %417 = vmatpush1.msra.mxu0 0.0
    %418 = vmatprep.subr.mxu0 0.0
    %419 = vmatpush1.msra.mxu0 0.0
    %420 = vmatprep.subr.mxu0 0.0
    %421 = vmatpush1.msra.mxu0 0.0
    %422 = vmatprep.subr.mxu0 0.0
    %423 = vmatpush1.msra.mxu0 0.0
    %424 = vmatprep.subr.mxu0 0.0
    %425 = vmatpush1.msra.mxu0 0.0
    %426 = vmatprep.subr.mxu0 0.0
    %427 = vmatpush1.msra.mxu0 0.0
    %428 = vmatprep.subr.mxu0 0.0
    %429 = vmatpush1.msra.mxu0 0.0
    %430 = vmatprep.subr.mxu0 0.0
    %431 = vmatpush1.msra.mxu0 0.0
    %432 = vmatprep.subr.mxu0 0.0
    %433 = vmatpush1.msra.mxu0 0.0
    %434 = vmatprep.subr.mxu0 0.0
    %435 = vmatpush1.msra.mxu0 0.0
    %436 = vmatprep.subr.mxu0 0.0
    %437 = vmatpush1.msra.mxu0 0.0
    %438 = vmatprep.subr.mxu0 0.0
    %439 = vmatpush1.msra.mxu0 0.0
    %440 = vmatprep.subr.mxu0 0.0
    %441 = vmatpush1.msra.mxu0 0.0
    %442 = vmatprep.subr.mxu0 0.0
    %443 = vmatpush1.msra.mxu0 0.0
    %444 = vmatprep.subr.mxu0 0.0
    %445 = vmatpush1.msra.mxu0 0.0
    %446 = vmatprep.subr.mxu0 0.0
    %447 = vmatpush1.msra.mxu0 0.0
    %448 = vmatprep.subr.mxu0 0.0
    %449 = vmatpush1.msra.mxu0 0.0
    %450 = vmatprep.subr.mxu0 0.0
    %451 = vmatpush1.msra.mxu0 0.0
    %452 = vmatprep.mubr.f32.mxu0 0.0
    %453 = vmatmul.mubr.f32.gmra.mrb[0].mxu0 %v383
    %v454 = vpop.f32.mrb[0].mxu0
    %v455 = vadd.f32 0.0, %v454
    %v456 = vpop.f32.mrb[0].mxu0
    %457 = vmatprep.mubr.f32.mxu0 0.0
    %458 = vmatmul.mubr.f32.gmra.mrb[0].mxu0 %v386
    %v459 = vpop.f32.mrb[0].mxu0
    %v460 = vadd.f32 0.0, %v459
    %v461 = vpop.f32.mrb[0].mxu0
    %462 = vdwg.mxu0
    %s463 = scalar_lea.vmem [#allocation2], 16
    %v464 = vld [vmem:[%s463] sm:$0xff]
    %465 = vmatprep.subr.mxu0 0.0
    %466 = vmatpush1.msra.mxu0 %v455
    %467 = vmatprep.subr.mxu0 0.0
    %468 = vmatpush1.msra.mxu0 %v460
    %469 = vmatprep.subr.mxu0 0.0
    %470 = vmatpush1.msra.mxu0 0.0
    %471 = vmatprep.subr.mxu0 0.0
    %472 = vmatpush1.msra.mxu0 0.0
    %473 = vmatprep.subr.mxu0 0.0
    %474 = vmatpush1.msra.mxu0 0.0
    %475 = vmatprep.subr.mxu0 0.0
    %476 = vmatpush1.msra.mxu0 0.0
    %477 = vmatprep.subr.mxu0 0.0
    %478 = vmatpush1.msra.mxu0 0.0
    %479 = vmatprep.subr.mxu0 0.0
    %480 = vmatpush1.msra.mxu0 0.0
    %481 = vmatprep.subr.mxu0 0.0
    %482 = vmatpush1.msra.mxu0 0.0
    %483 = vmatprep.subr.mxu0 0.0
    %484 = vmatpush1.msra.mxu0 0.0
    %485 = vmatprep.subr.mxu0 0.0
    %486 = vmatpush1.msra.mxu0 0.0
    %487 = vmatprep.subr.mxu0 0.0
    %488 = vmatpush1.msra.mxu0 0.0
    %489 = vmatprep.subr.mxu0 0.0
    %490 = vmatpush1.msra.mxu0 0.0
    %491 = vmatprep.subr.mxu0 0.0
    %492 = vmatpush1.msra.mxu0 0.0
    %493 = vmatprep.subr.mxu0 0.0
    %494 = vmatpush1.msra.mxu0 0.0
    %495 = vmatprep.subr.mxu0 0.0
    %496 = vmatpush1.msra.mxu0 0.0
    %497 = vmatprep.subr.mxu0 0.0
    %498 = vmatpush1.msra.mxu0 0.0
    %499 = vmatprep.subr.mxu0 0.0
    %500 = vmatpush1.msra.mxu0 0.0
    %501 = vmatprep.subr.mxu0 0.0
    %502 = vmatpush1.msra.mxu0 0.0
    %503 = vmatprep.subr.mxu0 0.0
    %504 = vmatpush1.msra.mxu0 0.0
    %505 = vmatprep.subr.mxu0 0.0
    %506 = vmatpush1.msra.mxu0 0.0
    %507 = vmatprep.subr.mxu0 0.0
    %508 = vmatpush1.msra.mxu0 0.0
    %509 = vmatprep.subr.mxu0 0.0
    %510 = vmatpush1.msra.mxu0 0.0
    %511 = vmatprep.subr.mxu0 0.0
    %512 = vmatpush1.msra.mxu0 0.0
    %513 = vmatprep.subr.mxu0 0.0
    %514 = vmatpush1.msra.mxu0 0.0
    %515 = vmatprep.subr.mxu0 0.0
    %516 = vmatpush1.msra.mxu0 0.0
    %517 = vmatprep.subr.mxu0 0.0
    %518 = vmatpush1.msra.mxu0 0.0
    %519 = vmatprep.subr.mxu0 0.0
    %520 = vmatpush1.msra.mxu0 0.0
    %521 = vmatprep.subr.mxu0 0.0
    %522 = vmatpush1.msra.mxu0 0.0
    %523 = vmatprep.subr.mxu0 0.0
    %524 = vmatpush1.msra.mxu0 0.0
    %525 = vmatprep.subr.mxu0 0.0
    %526 = vmatpush1.msra.mxu0 0.0
    %527 = vmatprep.subr.mxu0 0.0
    %528 = vmatpush1.msra.mxu0 0.0
    %529 = vmatprep.mubr.f32.mxu0 0.0
    %530 = vmatmul.mubr.f32.gmra.mrb[0].mxu0 %v146
    %v531 = vpop.f32.mrb[0].mxu0
    %v532 = vadd.f32 0.0, %v531
    %v533 = vpop.f32.mrb[0].mxu0
    %534 = vdwg.mxu0
    %v535 = vadd.f32 %v464, %v532
    %536 = vst.msk [vmem:[%s463] sm:$0xff] %vm219, %v535
    %s537 = scalar_lea.vmem [#allocation3], 48
    %v538 = vld [vmem:[%s537] sm:$0xff]
    %v539 = vld [vmem:[%s537 + $0x8] sm:$0xff]
    %v541 = vsel %vm62, %v538, 0
    %v544 = vsel %vm62, %v539, 0
    %546 = vmatprep.subr.mxu0 0.0
    %547 = vmatpush1.msra.mxu0 %v58
    %548 = vmatprep.subr.mxu0 0.0
    %549 = vmatpush1.msra.mxu0 %v59
    %550 = vmatprep.subr.mxu0 0.0
    %551 = vmatpush1.msra.mxu0 0.0
    %552 = vmatprep.subr.mxu0 0.0
    %553 = vmatpush1.msra.mxu0 0.0
    %554 = vmatprep.subr.mxu0 0.0
    %555 = vmatpush1.msra.mxu0 0.0
    %556 = vmatprep.subr.mxu0 0.0
    %557 = vmatpush1.msra.mxu0 0.0
    %558 = vmatprep.subr.mxu0 0.0
    %559 = vmatpush1.msra.mxu0 0.0
    %560 = vmatprep.subr.mxu0 0.0
    %561 = vmatpush1.msra.mxu0 0.0
    %562 = vmatprep.subr.mxu0 0.0
    %563 = vmatpush1.msra.mxu0 0.0
    %564 = vmatprep.subr.mxu0 0.0
    %565 = vmatpush1.msra.mxu0 0.0
    %566 = vmatprep.subr.mxu0 0.0
    %567 = vmatpush1.msra.mxu0 0.0
    %568 = vmatprep.subr.mxu0 0.0
    %569 = vmatpush1.msra.mxu0 0.0
    %570 = vmatprep.subr.mxu0 0.0
    %571 = vmatpush1.msra.mxu0 0.0
    %572 = vmatprep.subr.mxu0 0.0
    %573 = vmatpush1.msra.mxu0 0.0
    %574 = vmatprep.subr.mxu0 0.0
    %575 = vmatpush1.msra.mxu0 0.0
    %576 = vmatprep.subr.mxu0 0.0
    %577 = vmatpush1.msra.mxu0 0.0
    %578 = vmatprep.subr.mxu0 0.0
    %579 = vmatpush1.msra.mxu0 0.0
    %580 = vmatprep.subr.mxu0 0.0
    %581 = vmatpush1.msra.mxu0 0.0
    %582 = vmatprep.subr.mxu0 0.0
    %583 = vmatpush1.msra.mxu0 0.0
    %584 = vmatprep.subr.mxu0 0.0
    %585 = vmatpush1.msra.mxu0 0.0
    %586 = vmatprep.subr.mxu0 0.0
    %587 = vmatpush1.msra.mxu0 0.0
    %588 = vmatprep.subr.mxu0 0.0
    %589 = vmatpush1.msra.mxu0 0.0
    %590 = vmatprep.subr.mxu0 0.0
    %591 = vmatpush1.msra.mxu0 0.0
    %592 = vmatprep.subr.mxu0 0.0
    %593 = vmatpush1.msra.mxu0 0.0
    %594 = vmatprep.subr.mxu0 0.0
    %595 = vmatpush1.msra.mxu0 0.0
    %596 = vmatprep.subr.mxu0 0.0
    %597 = vmatpush1.msra.mxu0 0.0
    %598 = vmatprep.subr.mxu0 0.0
    %599 = vmatpush1.msra.mxu0 0.0
    %600 = vmatprep.subr.mxu0 0.0
    %601 = vmatpush1.msra.mxu0 0.0
    %602 = vmatprep.subr.mxu0 0.0
    %603 = vmatpush1.msra.mxu0 0.0
    %604 = vmatprep.subr.mxu0 0.0
    %605 = vmatpush1.msra.mxu0 0.0
    %606 = vmatprep.subr.mxu0 0.0
    %607 = vmatpush1.msra.mxu0 0.0
    %608 = vmatprep.subr.mxu0 0.0
    %609 = vmatpush1.msra.mxu0 0.0
    %610 = vmatprep.mubr.f32.mxu0 0.0
    %611 = vmatmul.mubr.f32.gmra.mrb[0].mxu0 %v541
    %v612 = vpop.f32.mrb[0].mxu0
    %v613 = vadd.f32 0.0, %v612
    %v614 = vpop.f32.mrb[0].mxu0
    %615 = vmatprep.mubr.f32.mxu0 0.0
    %616 = vmatmul.mubr.f32.gmra.mrb[0].mxu0 %v544
    %v617 = vpop.f32.mrb[0].mxu0
    %v618 = vadd.f32 0.0, %v617
    %v619 = vpop.f32.mrb[0].mxu0
    %620 = vdwg.mxu0
    %s621 = scalar_lea.vmem [#allocation2], 24
    %v622 = vld [vmem:[%s621] sm:$0xff]
    %623 = vmatprep.subr.mxu0 0.0
    %624 = vmatpush1.msra.mxu0 %v613
    %625 = vmatprep.subr.mxu0 0.0
    %626 = vmatpush1.msra.mxu0 %v618
    %627 = vmatprep.subr.mxu0 0.0
    %628 = vmatpush1.msra.mxu0 0.0
    %629 = vmatprep.subr.mxu0 0.0
    %630 = vmatpush1.msra.mxu0 0.0
    %631 = vmatprep.subr.mxu0 0.0
    %632 = vmatpush1.msra.mxu0 0.0
    %633 = vmatprep.subr.mxu0 0.0
    %634 = vmatpush1.msra.mxu0 0.0
    %635 = vmatprep.subr.mxu0 0.0
    %636 = vmatpush1.msra.mxu0 0.0
    %637 = vmatprep.subr.mxu0 0.0
    %638 = vmatpush1.msra.mxu0 0.0
    %639 = vmatprep.subr.mxu0 0.0
    %640 = vmatpush1.msra.mxu0 0.0
    %641 = vmatprep.subr.mxu0 0.0
    %642 = vmatpush1.msra.mxu0 0.0
    %643 = vmatprep.subr.mxu0 0.0
    %644 = vmatpush1.msra.mxu0 0.0
    %645 = vmatprep.subr.mxu0 0.0
    %646 = vmatpush1.msra.mxu0 0.0
    %647 = vmatprep.subr.mxu0 0.0
    %648 = vmatpush1.msra.mxu0 0.0
    %649 = vmatprep.subr.mxu0 0.0
    %650 = vmatpush1.msra.mxu0 0.0
    %651 = vmatprep.subr.mxu0 0.0
    %652 = vmatpush1.msra.mxu0 0.0
    %653 = vmatprep.subr.mxu0 0.0
    %654 = vmatpush1.msra.mxu0 0.0
    %655 = vmatprep.subr.mxu0 0.0
    %656 = vmatpush1.msra.mxu0 0.0
    %657 = vmatprep.subr.mxu0 0.0
    %658 = vmatpush1.msra.mxu0 0.0
    %659 = vmatprep.subr.mxu0 0.0
    %660 = vmatpush1.msra.mxu0 0.0
    %661 = vmatprep.subr.mxu0 0.0
    %662 = vmatpush1.msra.mxu0 0.0
    %663 = vmatprep.subr.mxu0 0.0
    %664 = vmatpush1.msra.mxu0 0.0
    %665 = vmatprep.subr.mxu0 0.0
    %666 = vmatpush1.msra.mxu0 0.0
    %667 = vmatprep.subr.mxu0 0.0
    %668 = vmatpush1.msra.mxu0 0.0
    %669 = vmatprep.subr.mxu0 0.0
    %670 = vmatpush1.msra.mxu0 0.0
    %671 = vmatprep.subr.mxu0 0.0
    %672 = vmatpush1.msra.mxu0 0.0
    %673 = vmatprep.subr.mxu0 0.0
    %674 = vmatpush1.msra.mxu0 0.0
    %675 = vmatprep.subr.mxu0 0.0
    %676 = vmatpush1.msra.mxu0 0.0
    %677 = vmatprep.subr.mxu0 0.0
    %678 = vmatpush1.msra.mxu0 0.0
    %679 = vmatprep.subr.mxu0 0.0
    %680 = vmatpush1.msra.mxu0 0.0
    %681 = vmatprep.subr.mxu0 0.0
    %682 = vmatpush1.msra.mxu0 0.0
    %683 = vmatprep.subr.mxu0 0.0
    %684 = vmatpush1.msra.mxu0 0.0
    %685 = vmatprep.subr.mxu0 0.0
    %686 = vmatpush1.msra.mxu0 0.0
    %687 = vmatprep.mubr.f32.mxu0 0.0
    %688 = vmatmul.mubr.f32.gmra.mrb[0].mxu0 %v146
    %v689 = vpop.f32.mrb[0].mxu0
    %v690 = vadd.f32 0.0, %v689
    %v691 = vpop.f32.mrb[0].mxu0
    %692 = vdwg.mxu0
    %v693 = vadd.f32 %v622, %v690
    %694 = vst.msk [vmem:[%s621] sm:$0xff] %vm219, %v693
    %s695 = scalar_lea.vmem [#allocation3], 64
    %v696 = vld [vmem:[%s695] sm:$0xff]
    %v697 = vld [vmem:[%s695 + $0x8] sm:$0xff]
    %v699 = vsel %vm62, %v696, 0
    %v702 = vsel %vm62, %v697, 0
    %704 = vmatprep.subr.mxu0 0.0
    %705 = vmatpush1.msra.mxu0 %v58
    %706 = vmatprep.subr.mxu0 0.0
    %707 = vmatpush1.msra.mxu0 %v59
    %708 = vmatprep.subr.mxu0 0.0
    %709 = vmatpush1.msra.mxu0 0.0
    %710 = vmatprep.subr.mxu0 0.0
    %711 = vmatpush1.msra.mxu0 0.0
    %712 = vmatprep.subr.mxu0 0.0
    %713 = vmatpush1.msra.mxu0 0.0
    %714 = vmatprep.subr.mxu0 0.0
    %715 = vmatpush1.msra.mxu0 0.0
    %716 = vmatprep.subr.mxu0 0.0
    %717 = vmatpush1.msra.mxu0 0.0
    %718 = vmatprep.subr.mxu0 0.0
    %719 = vmatpush1.msra.mxu0 0.0
    %720 = vmatprep.subr.mxu0 0.0
    %721 = vmatpush1.msra.mxu0 0.0
    %722 = vmatprep.subr.mxu0 0.0
    %723 = vmatpush1.msra.mxu0 0.0
    %724 = vmatprep.subr.mxu0 0.0
    %725 = vmatpush1.msra.mxu0 0.0
    %726 = vmatprep.subr.mxu0 0.0
    %727 = vmatpush1.msra.mxu0 0.0
    %728 = vmatprep.subr.mxu0 0.0
    %729 = vmatpush1.msra.mxu0 0.0
    %730 = vmatprep.subr.mxu0 0.0
    %731 = vmatpush1.msra.mxu0 0.0
    %732 = vmatprep.subr.mxu0 0.0
    %733 = vmatpush1.msra.mxu0 0.0
    %734 = vmatprep.subr.mxu0 0.0
    %735 = vmatpush1.msra.mxu0 0.0
    %736 = vmatprep.subr.mxu0 0.0
    %737 = vmatpush1.msra.mxu0 0.0
    %738 = vmatprep.subr.mxu0 0.0
    %739 = vmatpush1.msra.mxu0 0.0
    %740 = vmatprep.subr.mxu0 0.0
    %741 = vmatpush1.msra.mxu0 0.0
    %742 = vmatprep.subr.mxu0 0.0
    %743 = vmatpush1.msra.mxu0 0.0
    %744 = vmatprep.subr.mxu0 0.0
    %745 = vmatpush1.msra.mxu0 0.0
    %746 = vmatprep.subr.mxu0 0.0
    %747 = vmatpush1.msra.mxu0 0.0
    %748 = vmatprep.subr.mxu0 0.0
    %749 = vmatpush1.msra.mxu0 0.0
    %750 = vmatprep.subr.mxu0 0.0
    %751 = vmatpush1.msra.mxu0 0.0
    %752 = vmatprep.subr.mxu0 0.0
    %753 = vmatpush1.msra.mxu0 0.0
    %754 = vmatprep.subr.mxu0 0.0
    %755 = vmatpush1.msra.mxu0 0.0
    %756 = vmatprep.subr.mxu0 0.0
    %757 = vmatpush1.msra.mxu0 0.0
    %758 = vmatprep.subr.mxu0 0.0
    %759 = vmatpush1.msra.mxu0 0.0
    %760 = vmatprep.subr.mxu0 0.0
    %761 = vmatpush1.msra.mxu0 0.0
    %762 = vmatprep.subr.mxu0 0.0
    %763 = vmatpush1.msra.mxu0 0.0
    %764 = vmatprep.subr.mxu0 0.0
    %765 = vmatpush1.msra.mxu0 0.0
    %766 = vmatprep.subr.mxu0 0.0
    %767 = vmatpush1.msra.mxu0 0.0
    %768 = vmatprep.mubr.f32.mxu0 0.0
    %769 = vmatmul.mubr.f32.gmra.mrb[0].mxu0 %v699
    %v770 = vpop.f32.mrb[0].mxu0
    %v771 = vadd.f32 0.0, %v770
    %v772 = vpop.f32.mrb[0].mxu0
    %773 = vmatprep.mubr.f32.mxu0 0.0
    %774 = vmatmul.mubr.f32.gmra.mrb[0].mxu0 %v702
    %v775 = vpop.f32.mrb[0].mxu0
    %v776 = vadd.f32 0.0, %v775
    %v777 = vpop.f32.mrb[0].mxu0
    %778 = vdwg.mxu0
    %s779 = scalar_lea.vmem [#allocation2], 32
    %v780 = vld [vmem:[%s779] sm:$0xff]
    %781 = vmatprep.subr.mxu0 0.0
    %782 = vmatpush1.msra.mxu0 %v771
    %783 = vmatprep.subr.mxu0 0.0
    %784 = vmatpush1.msra.mxu0 %v776
    %785 = vmatprep.subr.mxu0 0.0
    %786 = vmatpush1.msra.mxu0 0.0
    %787 = vmatprep.subr.mxu0 0.0
    %788 = vmatpush1.msra.mxu0 0.0
    %789 = vmatprep.subr.mxu0 0.0
    %790 = vmatpush1.msra.mxu0 0.0
    %791 = vmatprep.subr.mxu0 0.0
    %792 = vmatpush1.msra.mxu0 0.0
    %793 = vmatprep.subr.mxu0 0.0
    %794 = vmatpush1.msra.mxu0 0.0
    %795 = vmatprep.subr.mxu0 0.0
    %796 = vmatpush1.msra.mxu0 0.0
    %797 = vmatprep.subr.mxu0 0.0
    %798 = vmatpush1.msra.mxu0 0.0
    %799 = vmatprep.subr.mxu0 0.0
    %800 = vmatpush1.msra.mxu0 0.0
    %801 = vmatprep.subr.mxu0 0.0
    %802 = vmatpush1.msra.mxu0 0.0
    %803 = vmatprep.subr.mxu0 0.0
    %804 = vmatpush1.msra.mxu0 0.0
    %805 = vmatprep.subr.mxu0 0.0
    %806 = vmatpush1.msra.mxu0 0.0
    %807 = vmatprep.subr.mxu0 0.0
    %808 = vmatpush1.msra.mxu0 0.0
    %809 = vmatprep.subr.mxu0 0.0
    %810 = vmatpush1.msra.mxu0 0.0
    %811 = vmatprep.subr.mxu0 0.0
    %812 = vmatpush1.msra.mxu0 0.0
    %813 = vmatprep.subr.mxu0 0.0
    %814 = vmatpush1.msra.mxu0 0.0
    %815 = vmatprep.subr.mxu0 0.0
    %816 = vmatpush1.msra.mxu0 0.0
    %817 = vmatprep.subr.mxu0 0.0
    %818 = vmatpush1.msra.mxu0 0.0
    %819 = vmatprep.subr.mxu0 0.0
    %820 = vmatpush1.msra.mxu0 0.0
    %821 = vmatprep.subr.mxu0 0.0
    %822 = vmatpush1.msra.mxu0 0.0
    %823 = vmatprep.subr.mxu0 0.0
    %824 = vmatpush1.msra.mxu0 0.0
    %825 = vmatprep.subr.mxu0 0.0
    %826 = vmatpush1.msra.mxu0 0.0
    %827 = vmatprep.subr.mxu0 0.0
    %828 = vmatpush1.msra.mxu0 0.0
    %829 = vmatprep.subr.mxu0 0.0
    %830 = vmatpush1.msra.mxu0 0.0
    %831 = vmatprep.subr.mxu0 0.0
    %832 = vmatpush1.msra.mxu0 0.0
    %833 = vmatprep.subr.mxu0 0.0
    %834 = vmatpush1.msra.mxu0 0.0
    %835 = vmatprep.subr.mxu0 0.0
    %836 = vmatpush1.msra.mxu0 0.0
    %837 = vmatprep.subr.mxu0 0.0
    %838 = vmatpush1.msra.mxu0 0.0
    %839 = vmatprep.subr.mxu0 0.0
    %840 = vmatpush1.msra.mxu0 0.0
    %841 = vmatprep.subr.mxu0 0.0
    %842 = vmatpush1.msra.mxu0 0.0
    %843 = vmatprep.subr.mxu0 0.0
    %844 = vmatpush1.msra.mxu0 0.0
    %845 = vmatprep.mubr.f32.mxu0 0.0
    %846 = vmatmul.mubr.f32.gmra.mrb[0].mxu0 %v146
    %v847 = vpop.f32.mrb[0].mxu0
    %v848 = vadd.f32 0.0, %v847
    %v849 = vpop.f32.mrb[0].mxu0
    %850 = vdwg.mxu0
    %v851 = vadd.f32 %v780, %v848
    %852 = vst.msk [vmem:[%s779] sm:$0xff] %vm219, %v851
    // Predicated region
    $region30: #{tpu_custom_call.1} parent=1 // pred_check
      %p853 = pneg %p47
    $region31: #{tpu_custom_call.1} parent=1 // pred_check_branch
      %855 = sbr.rel (%p853) target = $region33
    $region32: #{tpu_custom_call.1} parent=1 // pred_region
      %v856 = vld [vmem:[#allocation2] sm:$0x1]
      %v857 = vld [vmem:[#allocation2 + $0x8] sm:$0x1]
      %v858 = vld [vmem:[#allocation2 + $0x10] sm:$0x1]
      %v859 = vld [vmem:[#allocation2 + $0x18] sm:$0x1]
      %v860 = vld [vmem:[#allocation2 + $0x20] sm:$0x1]
      %v866 = vrot.slane %v857, 7
      %vm867 = vcmask 1041409
      %v868 = vsel %vm867, %v866, %v856
      %v869 = vrot.slane %v858, 6
      %vm870 = vcmask 1042434
      %v871 = vsel %vm870, %v869, %v868
      %v872 = vrot.slane %v859, 5
      %vm873 = vcmask 1043459
      %v874 = vsel %vm873, %v872, %v871
      %v875 = vrot.slane %v860, 4
      %vm876 = vcmask 1044484
      %v877 = vsel %vm876, %v875, %v874
      %vm879 = vcmask 61440
      %880 = vst.msk [vmem:[#allocation8] sm:$0x1f] %vm879, %v877
      %v881 = vpack.c.bf16 %v856, %v856
      %v882 = vpack.c.bf16 %v857, %v857
      %v883 = vpack.c.bf16 %v858, %v858
      %v884 = vpack.c.bf16 %v859, %v859
      %v885 = vpack.c.bf16 %v860, %v860
      %v886 = vld [vmem:[#allocation6] sm:$0xff]
      %v887 = vld [vmem:[#allocation2 + $0x1] sm:$0x1]
      %v888 = vld [vmem:[#allocation2 + $0x9] sm:$0x1]
      %v889 = vld [vmem:[#allocation2 + $0x11] sm:$0x1]
      %v890 = vld [vmem:[#allocation2 + $0x19] sm:$0x1]
      %v891 = vld [vmem:[#allocation2 + $0x21] sm:$0x1]
      %v897 = vrot.slane %v888, 7
      %v898 = vsel %vm867, %v897, %v887
      %v899 = vrot.slane %v889, 6
      %v900 = vsel %vm870, %v899, %v898
      %v901 = vrot.slane %v890, 5
      %v902 = vsel %vm873, %v901, %v900
      %v903 = vrot.slane %v891, 4
      %v904 = vsel %vm876, %v903, %v902
      %905 = vrot.lane.b32.xlu0 %v904, 8
      %v906 = vpop.permute.xlu0 %905
      %vm908 = vcmask 127040
      %909 = vst.msk [vmem:[#allocation8] sm:$0x1f] %vm908, %v906
      %v910 = vpack.c.bf16 %v887, %v887
      %v911 = vpack.c.bf16 %v888, %v888
      %v912 = vpack.c.bf16 %v889, %v889
      %v913 = vpack.c.bf16 %v890, %v890
      %v914 = vpack.c.bf16 %v891, %v891
      %s915 = scalar_lea.vmem [#allocation6], 8
      %v916 = vld [vmem:[%s915] sm:$0xff]
      %v922 = vunpack.c.l.b16 %v910
      %v923 = vunpack.c.l.b16 %v911
      %v924 = vunpack.c.l.b16 %v912
      %v925 = vunpack.c.l.b16 %v913
      %v926 = vunpack.c.l.b16 %v914
      %v927 = vrot.slane %v923, 7
      %v928 = vsel %vm867, %v927, %v922
      %v929 = vrot.slane %v924, 6
      %v930 = vsel %vm870, %v929, %v928
      %v931 = vrot.slane %v925, 5
      %v932 = vsel %vm873, %v931, %v930
      %v933 = vrot.slane %v926, 4
      %v934 = vsel %vm876, %v933, %v932
      %v935 = vpack.c.b16 %v934, %v934
      %v937 = vunpack.c.l.b16 %v916
      %v938 = vunpack.c.h.b16 %v916
      %v939 = vpack.c.b16 %v937, %v937
      %v940 = vpack.c.b16 %v938, %v938
      %v942 = vsel %vm219, %v935, 0
      %vm944 = vcmask 1043456
      %v946 = vsel %vm944, %v939, 0
      %v949 = vsel %vm944, %v940, 0
      %951 = vmatprep.subr.bf16.mxu0 %v949
      %952 = vmatpush1.bf16.msra.mxu0 %v946
      %953 = vmatprep.subr.bf16.mxu0 0
      %954 = vmatpush1.bf16.msra.mxu0 0
      %955 = vmatprep.subr.bf16.mxu0 0
      %956 = vmatpush1.bf16.msra.mxu0 0
      %957 = vmatprep.subr.bf16.mxu0 0
      %958 = vmatpush1.bf16.msra.mxu0 0
      %959 = vmatprep.subr.bf16.mxu0 0
      %960 = vmatpush1.bf16.msra.mxu0 0
      %961 = vmatprep.subr.bf16.mxu0 0
      %962 = vmatpush1.bf16.msra.mxu0 0
      %963 = vmatprep.subr.bf16.mxu0 0
      %964 = vmatpush1.bf16.msra.mxu0 0
      %965 = vmatprep.subr.bf16.mxu0 0
      %966 = vmatpush1.bf16.msra.mxu0 0
      %967 = vmatprep.subr.bf16.mxu0 0
      %968 = vmatpush1.bf16.msra.mxu0 0
      %969 = vmatprep.subr.bf16.mxu0 0
      %970 = vmatpush1.bf16.msra.mxu0 0
      %971 = vmatprep.subr.bf16.mxu0 0
      %972 = vmatpush1.bf16.msra.mxu0 0
      %973 = vmatprep.subr.bf16.mxu0 0
      %974 = vmatpush1.bf16.msra.mxu0 0
      %975 = vmatprep.subr.bf16.mxu0 0
      %976 = vmatpush1.bf16.msra.mxu0 0
      %977 = vmatprep.subr.bf16.mxu0 0
      %978 = vmatpush1.bf16.msra.mxu0 0
      %979 = vmatprep.subr.bf16.mxu0 0
      %980 = vmatpush1.bf16.msra.mxu0 0
      %981 = vmatprep.subr.bf16.mxu0 0
      %982 = vmatpush1.bf16.msra.mxu0 0
      %983 = vmatprep.mubr.bf16.mxu0 0
      %984 = vmatmul.mubr.bf16.gmra.mrb[0].mxu0 %v942
      %v985 = vpop.f32.mrb[0].mxu0
      %v986 = vadd.f32 0.0, %v985
      %v987 = vpop.f32.mrb[0].mxu0
      %v988 = vadd.f32 0.0, %v987
      %v989 = vpop.f32.mrb[0].mxu0
      %v990 = vpop.f32.mrb[0].mxu0
      %991 = vdwg.mxu0
      %v997 = vunpack.c.l.b16 %v881
      %v998 = vunpack.c.l.b16 %v882
      %v999 = vunpack.c.l.b16 %v883
      %v1000 = vunpack.c.l.b16 %v884
      %v1001 = vunpack.c.l.b16 %v885
      %v1002 = vrot.slane %v998, 7
      %v1003 = vsel %vm867, %v1002, %v997
      %v1004 = vrot.slane %v999, 6
      %v1005 = vsel %vm870, %v1004, %v1003
      %v1006 = vrot.slane %v1000, 5
      %v1007 = vsel %vm873, %v1006, %v1005
      %v1008 = vrot.slane %v1001, 4
      %v1009 = vsel %vm876, %v1008, %v1007
      %v1010 = vpack.c.b16 %v1009, %v1009
      %v1012 = vunpack.c.l.b16 %v886
      %v1013 = vunpack.c.h.b16 %v886
      %v1014 = vpack.c.b16 %v1012, %v1012
      %v1015 = vpack.c.b16 %v1013, %v1013
      %v1017 = vsel %vm219, %v1010, 0
      %v1020 = vsel %vm944, %v1014, 0
      %v1023 = vsel %vm944, %v1015, 0
      %1025 = vmatprep.subr.bf16.mxu0 %v1023
      %1026 = vmatpush1.bf16.msra.mxu0 %v1020
      %1027 = vmatprep.subr.bf16.mxu0 0
      %1028 = vmatpush1.bf16.msra.mxu0 0
      %1029 = vmatprep.subr.bf16.mxu0 0
      %1030 = vmatpush1.bf16.msra.mxu0 0
      %1031 = vmatprep.subr.bf16.mxu0 0
      %1032 = vmatpush1.bf16.msra.mxu0 0
      %1033 = vmatprep.subr.bf16.mxu0 0
      %1034 = vmatpush1.bf16.msra.mxu0 0
      %1035 = vmatprep.subr.bf16.mxu0 0
      %1036 = vmatpush1.bf16.msra.mxu0 0
      %1037 = vmatprep.subr.bf16.mxu0 0
      %1038 = vmatpush1.bf16.msra.mxu0 0
      %1039 = vmatprep.subr.bf16.mxu0 0
      %1040 = vmatpush1.bf16.msra.mxu0 0
      %1041 = vmatprep.subr.bf16.mxu0 0
      %1042 = vmatpush1.bf16.msra.mxu0 0
      %1043 = vmatprep.subr.bf16.mxu0 0
      %1044 = vmatpush1.bf16.msra.mxu0 0
      %1045 = vmatprep.subr.bf16.mxu0 0
      %1046 = vmatpush1.bf16.msra.mxu0 0
      %1047 = vmatprep.subr.bf16.mxu0 0
      %1048 = vmatpush1.bf16.msra.mxu0 0
      %1049 = vmatprep.subr.bf16.mxu0 0
      %1050 = vmatpush1.bf16.msra.mxu0 0
      %1051 = vmatprep.subr.bf16.mxu0 0
      %1052 = vmatpush1.bf16.msra.mxu0 0
      %1053 = vmatprep.subr.bf16.mxu0 0
      %1054 = vmatpush1.bf16.msra.mxu0 0
      %1055 = vmatprep.subr.bf16.mxu0 0
      %1056 = vmatpush1.bf16.msra.mxu0 0
      %1057 = vmatprep.mubr.bf16.mxu0 0
      %1058 = vmatmul.mubr.bf16.gmra.mrb[0].mxu0 %v1017
      %v1059 = vpop.f32.mrb[0].mxu0
      %v1060 = vadd.f32 %v986, %v1059
      %v1061 = vpop.f32.mrb[0].mxu0
      %v1062 = vadd.f32 %v988, %v1061
      %v1063 = vpop.f32.mrb[0].mxu0
      %v1064 = vpop.f32.mrb[0].mxu0
      %1065 = vdwg.mxu0
      %v1066 = vld [vmem:[#allocation2 + $0x2] sm:$0x1]
      %v1067 = vld [vmem:[#allocation2 + $0xa] sm:$0x1]
      %v1068 = vld [vmem:[#allocation2 + $0x12] sm:$0x1]
      %v1069 = vld [vmem:[#allocation2 + $0x1a] sm:$0x1]
      %v1070 = vld [vmem:[#allocation2 + $0x22] sm:$0x1]
      %v1076 = vrot.slane %v1067, 7
      %v1077 = vsel %vm867, %v1076, %v1066
      %v1078 = vrot.slane %v1068, 6
      %v1079 = vsel %vm870, %v1078, %v1077
      %v1080 = vrot.slane %v1069, 5
      %v1081 = vsel %vm873, %v1080, %v1079
      %v1082 = vrot.slane %v1070, 4
      %v1083 = vsel %vm876, %v1082, %v1081
      %1084 = vrot.lane.b32.xlu0 %v1083, 16
      %v1085 = vpop.permute.xlu0 %1084
      %vm1087 = vcmask 192640
      %1088 = vst.msk [vmem:[#allocation8] sm:$0x1f] %vm1087, %v1085
      %v1089 = vpack.c.bf16 %v1066, %v1066
      %v1090 = vpack.c.bf16 %v1067, %v1067
      %v1091 = vpack.c.bf16 %v1068, %v1068
      %v1092 = vpack.c.bf16 %v1069, %v1069
      %v1093 = vpack.c.bf16 %v1070, %v1070
      %s1094 = scalar_lea.vmem [#allocation6], 16
      %v1095 = vld [vmem:[%s1094] sm:$0xff]
      %v1101 = vunpack.c.l.b16 %v1089
      %v1102 = vunpack.c.l.b16 %v1090
      %v1103 = vunpack.c.l.b16 %v1091
      %v1104 = vunpack.c.l.b16 %v1092
      %v1105 = vunpack.c.l.b16 %v1093
      %v1106 = vrot.slane %v1102, 7
      %v1107 = vsel %vm867, %v1106, %v1101
      %v1108 = vrot.slane %v1103, 6
      %v1109 = vsel %vm870, %v1108, %v1107
      %v1110 = vrot.slane %v1104, 5
      %v1111 = vsel %vm873, %v1110, %v1109
      %v1112 = vrot.slane %v1105, 4
      %v1113 = vsel %vm876, %v1112, %v1111
      %v1114 = vpack.c.b16 %v1113, %v1113
      %v1116 = vunpack.c.l.b16 %v1095
      %v1117 = vunpack.c.h.b16 %v1095
      %v1118 = vpack.c.b16 %v1116, %v1116
      %v1119 = vpack.c.b16 %v1117, %v1117
      %v1121 = vsel %vm219, %v1114, 0
      %v1124 = vsel %vm944, %v1118, 0
      %v1127 = vsel %vm944, %v1119, 0
      %1129 = vmatprep.subr.bf16.mxu0 %v1127
      %1130 = vmatpush1.bf16.msra.mxu0 %v1124
      %1131 = vmatprep.subr.bf16.mxu0 0
      %1132 = vmatpush1.bf16.msra.mxu0 0
      %1133 = vmatprep.subr.bf16.mxu0 0
      %1134 = vmatpush1.bf16.msra.mxu0 0
      %1135 = vmatprep.subr.bf16.mxu0 0
      %1136 = vmatpush1.bf16.msra.mxu0 0
      %1137 = vmatprep.subr.bf16.mxu0 0
      %1138 = vmatpush1.bf16.msra.mxu0 0
      %1139 = vmatprep.subr.bf16.mxu0 0
      %1140 = vmatpush1.bf16.msra.mxu0 0
      %1141 = vmatprep.subr.bf16.mxu0 0
      %1142 = vmatpush1.bf16.msra.mxu0 0
      %1143 = vmatprep.subr.bf16.mxu0 0
      %1144 = vmatpush1.bf16.msra.mxu0 0
      %1145 = vmatprep.subr.bf16.mxu0 0
      %1146 = vmatpush1.bf16.msra.mxu0 0
      %1147 = vmatprep.subr.bf16.mxu0 0
      %1148 = vmatpush1.bf16.msra.mxu0 0
      %1149 = vmatprep.subr.bf16.mxu0 0
      %1150 = vmatpush1.bf16.msra.mxu0 0
      %1151 = vmatprep.subr.bf16.mxu0 0
      %1152 = vmatpush1.bf16.msra.mxu0 0
      %1153 = vmatprep.subr.bf16.mxu0 0
      %1154 = vmatpush1.bf16.msra.mxu0 0
      %1155 = vmatprep.subr.bf16.mxu0 0
      %1156 = vmatpush1.bf16.msra.mxu0 0
      %1157 = vmatprep.subr.bf16.mxu0 0
      %1158 = vmatpush1.bf16.msra.mxu0 0
      %1159 = vmatprep.subr.bf16.mxu0 0
      %1160 = vmatpush1.bf16.msra.mxu0 0
      %1161 = vmatprep.mubr.bf16.mxu0 0
      %1162 = vmatmul.mubr.bf16.gmra.mrb[0].mxu0 %v1121
      %v1163 = vpop.f32.mrb[0].mxu0
      %v1164 = vadd.f32 0.0, %v1163
      %v1165 = vpop.f32.mrb[0].mxu0
      %v1166 = vadd.f32 0.0, %v1165
      %v1167 = vpop.f32.mrb[0].mxu0
      %v1168 = vpop.f32.mrb[0].mxu0
      %1169 = vdwg.mxu0
      %v1170 = vadd.f32 %v1060, %v1164
      %v1171 = vadd.f32 %v1062, %v1166
      %v1172 = vld [vmem:[#allocation2 + $0x3] sm:$0x1]
      %v1173 = vld [vmem:[#allocation2 + $0xb] sm:$0x1]
      %v1174 = vld [vmem:[#allocation2 + $0x13] sm:$0x1]
      %v1175 = vld [vmem:[#allocation2 + $0x1b] sm:$0x1]
      %v1176 = vld [vmem:[#allocation2 + $0x23] sm:$0x1]
      %v1182 = vrot.slane %v1173, 7
      %v1183 = vsel %vm867, %v1182, %v1172
      %v1184 = vrot.slane %v1174, 6
      %v1185 = vsel %vm870, %v1184, %v1183
      %v1186 = vrot.slane %v1175, 5
      %v1187 = vsel %vm873, %v1186, %v1185
      %v1188 = vrot.slane %v1176, 4
      %v1189 = vsel %vm876, %v1188, %v1187
      %1190 = vrot.lane.b32.xlu0 %v1189, 24
      %v1191 = vpop.permute.xlu0 %1190
      %vm1193 = vcmask 258240
      %1194 = vst.msk [vmem:[#allocation8] sm:$0x1f] %vm1193, %v1191
      %v1195 = vpack.c.bf16 %v1172, %v1172
      %v1196 = vpack.c.bf16 %v1173, %v1173
      %v1197 = vpack.c.bf16 %v1174, %v1174
      %v1198 = vpack.c.bf16 %v1175, %v1175
      %v1199 = vpack.c.bf16 %v1176, %v1176
      %s1200 = scalar_lea.vmem [#allocation6], 24
      %v1201 = vld [vmem:[%s1200] sm:$0xff]
      %v1207 = vunpack.c.l.b16 %v1195
      %v1208 = vunpack.c.l.b16 %v1196
      %v1209 = vunpack.c.l.b16 %v1197
      %v1210 = vunpack.c.l.b16 %v1198
      %v1211 = vunpack.c.l.b16 %v1199
      %v1212 = vrot.slane %v1208, 7
      %v1213 = vsel %vm867, %v1212, %v1207
      %v1214 = vrot.slane %v1209, 6
      %v1215 = vsel %vm870, %v1214, %v1213
      %v1216 = vrot.slane %v1210, 5
      %v1217 = vsel %vm873, %v1216, %v1215
      %v1218 = vrot.slane %v1211, 4
      %v1219 = vsel %vm876, %v1218, %v1217
      %v1220 = vpack.c.b16 %v1219, %v1219
      %v1222 = vunpack.c.l.b16 %v1201
      %v1223 = vunpack.c.h.b16 %v1201
      %v1224 = vpack.c.b16 %v1222, %v1222
      %v1225 = vpack.c.b16 %v1223, %v1223
      %v1227 = vsel %vm219, %v1220, 0
      %v1230 = vsel %vm944, %v1224, 0
      %v1233 = vsel %vm944, %v1225, 0
      %1235 = vmatprep.subr.bf16.mxu0 %v1233
      %1236 = vmatpush1.bf16.msra.mxu0 %v1230
      %1237 = vmatprep.subr.bf16.mxu0 0
      %1238 = vmatpush1.bf16.msra.mxu0 0
      %1239 = vmatprep.subr.bf16.mxu0 0
      %1240 = vmatpush1.bf16.msra.mxu0 0
      %1241 = vmatprep.subr.bf16.mxu0 0
      %1242 = vmatpush1.bf16.msra.mxu0 0
      %1243 = vmatprep.subr.bf16.mxu0 0
      %1244 = vmatpush1.bf16.msra.mxu0 0
      %1245 = vmatprep.subr.bf16.mxu0 0
      %1246 = vmatpush1.bf16.msra.mxu0 0
      %1247 = vmatprep.subr.bf16.mxu0 0
      %1248 = vmatpush1.bf16.msra.mxu0 0
      %1249 = vmatprep.subr.bf16.mxu0 0
      %1250 = vmatpush1.bf16.msra.mxu0 0
      %1251 = vmatprep.subr.bf16.mxu0 0
      %1252 = vmatpush1.bf16.msra.mxu0 0
      %1253 = vmatprep.subr.bf16.mxu0 0
      %1254 = vmatpush1.bf16.msra.mxu0 0
      %1255 = vmatprep.subr.bf16.mxu0 0
      %1256 = vmatpush1.bf16.msra.mxu0 0
      %1257 = vmatprep.subr.bf16.mxu0 0
      %1258 = vmatpush1.bf16.msra.mxu0 0
      %1259 = vmatprep.subr.bf16.mxu0 0
      %1260 = vmatpush1.bf16.msra.mxu0 0
      %1261 = vmatprep.subr.bf16.mxu0 0
      %1262 = vmatpush1.bf16.msra.mxu0 0
      %1263 = vmatprep.subr.bf16.mxu0 0
      %1264 = vmatpush1.bf16.msra.mxu0 0
      %1265 = vmatprep.subr.bf16.mxu0 0
      %1266 = vmatpush1.bf16.msra.mxu0 0
      %1267 = vmatprep.mubr.bf16.mxu0 0
      %1268 = vmatmul.mubr.bf16.gmra.mrb[0].mxu0 %v1227
      %v1269 = vpop.f32.mrb[0].mxu0
      %v1270 = vadd.f32 0.0, %v1269
      %v1271 = vpop.f32.mrb[0].mxu0
      %v1272 = vadd.f32 0.0, %v1271
      %v1273 = vpop.f32.mrb[0].mxu0
      %v1274 = vpop.f32.mrb[0].mxu0
      %1275 = vdwg.mxu0
      %v1276 = vadd.f32 %v1170, %v1270
      %v1277 = vadd.f32 %v1171, %v1272
      %v1278 = vld [vmem:[#allocation2 + $0x4] sm:$0x1]
      %v1279 = vld [vmem:[#allocation2 + $0xc] sm:$0x1]
      %v1280 = vld [vmem:[#allocation2 + $0x14] sm:$0x1]
      %v1281 = vld [vmem:[#allocation2 + $0x1c] sm:$0x1]
      %v1282 = vld [vmem:[#allocation2 + $0x24] sm:$0x1]
      %v1288 = vrot.slane %v1279, 7
      %v1289 = vsel %vm867, %v1288, %v1278
      %v1290 = vrot.slane %v1280, 6
      %v1291 = vsel %vm870, %v1290, %v1289
      %v1292 = vrot.slane %v1281, 5
      %v1293 = vsel %vm873, %v1292, %v1291
      %v1294 = vrot.slane %v1282, 4
      %v1295 = vsel %vm876, %v1294, %v1293
      %1296 = vrot.lane.b32.xlu0 %v1295, 32
      %v1297 = vpop.permute.xlu0 %1296
      %vm1299 = vcmask 323840
      %1300 = vst.msk [vmem:[#allocation8] sm:$0x1f] %vm1299, %v1297
      %v1301 = vpack.c.bf16 %v1278, %v1278
      %v1302 = vpack.c.bf16 %v1279, %v1279
      %v1303 = vpack.c.bf16 %v1280, %v1280
      %v1304 = vpack.c.bf16 %v1281, %v1281
      %v1305 = vpack.c.bf16 %v1282, %v1282
      %s1306 = scalar_lea.vmem [#allocation6], 32
      %v1307 = vld [vmem:[%s1306] sm:$0xff]
      %v1313 = vunpack.c.l.b16 %v1301
      %v1314 = vunpack.c.l.b16 %v1302
      %v1315 = vunpack.c.l.b16 %v1303
      %v1316 = vunpack.c.l.b16 %v1304
      %v1317 = vunpack.c.l.b16 %v1305
      %v1318 = vrot.slane %v1314, 7
      %v1319 = vsel %vm867, %v1318, %v1313
      %v1320 = vrot.slane %v1315, 6
      %v1321 = vsel %vm870, %v1320, %v1319
      %v1322 = vrot.slane %v1316, 5
      %v1323 = vsel %vm873, %v1322, %v1321
      %v1324 = vrot.slane %v1317, 4
      %v1325 = vsel %vm876, %v1324, %v1323
      %v1326 = vpack.c.b16 %v1325, %v1325
      %v1328 = vunpack.c.l.b16 %v1307
      %v1329 = vunpack.c.h.b16 %v1307
      %v1330 = vpack.c.b16 %v1328, %v1328
      %v1331 = vpack.c.b16 %v1329, %v1329
      %v1333 = vsel %vm219, %v1326, 0
      %v1336 = vsel %vm944, %v1330, 0
      %v1339 = vsel %vm944, %v1331, 0
      %1341 = vmatprep.subr.bf16.mxu0 %v1339
      %1342 = vmatpush1.bf16.msra.mxu0 %v1336
      %1343 = vmatprep.subr.bf16.mxu0 0
      %1344 = vmatpush1.bf16.msra.mxu0 0
      %1345 = vmatprep.subr.bf16.mxu0 0
      %1346 = vmatpush1.bf16.msra.mxu0 0
      %1347 = vmatprep.subr.bf16.mxu0 0
      %1348 = vmatpush1.bf16.msra.mxu0 0
      %1349 = vmatprep.subr.bf16.mxu0 0
      %1350 = vmatpush1.bf16.msra.mxu0 0
      %1351 = vmatprep.subr.bf16.mxu0 0
      %1352 = vmatpush1.bf16.msra.mxu0 0
      %1353 = vmatprep.subr.bf16.mxu0 0
      %1354 = vmatpush1.bf16.msra.mxu0 0
      %1355 = vmatprep.subr.bf16.mxu0 0
      %1356 = vmatpush1.bf16.msra.mxu0 0
      %1357 = vmatprep.subr.bf16.mxu0 0
      %1358 = vmatpush1.bf16.msra.mxu0 0
      %1359 = vmatprep.subr.bf16.mxu0 0
      %1360 = vmatpush1.bf16.msra.mxu0 0
      %1361 = vmatprep.subr.bf16.mxu0 0
      %1362 = vmatpush1.bf16.msra.mxu0 0
      %1363 = vmatprep.subr.bf16.mxu0 0
      %1364 = vmatpush1.bf16.msra.mxu0 0
      %1365 = vmatprep.subr.bf16.mxu0 0
      %1366 = vmatpush1.bf16.msra.mxu0 0
      %1367 = vmatprep.subr.bf16.mxu0 0
      %1368 = vmatpush1.bf16.msra.mxu0 0
      %1369 = vmatprep.subr.bf16.mxu0 0
      %1370 = vmatpush1.bf16.msra.mxu0 0
      %1371 = vmatprep.subr.bf16.mxu0 0
      %1372 = vmatpush1.bf16.msra.mxu0 0
      %1373 = vmatprep.mubr.bf16.mxu0 0
      %1374 = vmatmul.mubr.bf16.gmra.mrb[0].mxu0 %v1333
      %v1375 = vpop.f32.mrb[0].mxu0
      %v1376 = vadd.f32 0.0, %v1375
      %v1377 = vpop.f32.mrb[0].mxu0
      %v1378 = vadd.f32 0.0, %v1377
      %v1379 = vpop.f32.mrb[0].mxu0
      %v1380 = vpop.f32.mrb[0].mxu0
      %1381 = vdwg.mxu0
      %v1382 = vadd.f32 %v1276, %v1376
      %v1383 = vadd.f32 %v1277, %v1378
      %v1384 = vld [vmem:[#allocation2 + $0x5] sm:$0x1]
      %v1385 = vld [vmem:[#allocation2 + $0xd] sm:$0x1]
      %v1386 = vld [vmem:[#allocation2 + $0x15] sm:$0x1]
      %v1387 = vld [vmem:[#allocation2 + $0x1d] sm:$0x1]
      %v1388 = vld [vmem:[#allocation2 + $0x25] sm:$0x1]
      %v1394 = vrot.slane %v1385, 7
      %v1395 = vsel %vm867, %v1394, %v1384
      %v1396 = vrot.slane %v1386, 6
      %v1397 = vsel %vm870, %v1396, %v1395
      %v1398 = vrot.slane %v1387, 5
      %v1399 = vsel %vm873, %v1398, %v1397
      %v1400 = vrot.slane %v1388, 4
      %v1401 = vsel %vm876, %v1400, %v1399
      %1402 = vrot.lane.b32.xlu0 %v1401, 40
      %v1403 = vpop.permute.xlu0 %1402
      %vm1405 = vcmask 389440
      %1406 = vst.msk [vmem:[#allocation8] sm:$0x1f] %vm1405, %v1403
      %v1407 = vpack.c.bf16 %v1384, %v1384
      %v1408 = vpack.c.bf16 %v1385, %v1385
      %v1409 = vpack.c.bf16 %v1386, %v1386
      %v1410 = vpack.c.bf16 %v1387, %v1387
      %v1411 = vpack.c.bf16 %v1388, %v1388
      %s1412 = scalar_lea.vmem [#allocation6], 40
      %v1413 = vld [vmem:[%s1412] sm:$0xff]
      %v1419 = vunpack.c.l.b16 %v1407
      %v1420 = vunpack.c.l.b16 %v1408
      %v1421 = vunpack.c.l.b16 %v1409
      %v1422 = vunpack.c.l.b16 %v1410
      %v1423 = vunpack.c.l.b16 %v1411
      %v1424 = vrot.slane %v1420, 7
      %v1425 = vsel %vm867, %v1424, %v1419
      %v1426 = vrot.slane %v1421, 6
      %v1427 = vsel %vm870, %v1426, %v1425
      %v1428 = vrot.slane %v1422, 5
      %v1429 = vsel %vm873, %v1428, %v1427
      %v1430 = vrot.slane %v1423, 4
      %v1431 = vsel %vm876, %v1430, %v1429
      %v1432 = vpack.c.b16 %v1431, %v1431
      %v1434 = vunpack.c.l.b16 %v1413
      %v1435 = vunpack.c.h.b16 %v1413
      %v1436 = vpack.c.b16 %v1434, %v1434
      %v1437 = vpack.c.b16 %v1435, %v1435
      %v1439 = vsel %vm219, %v1432, 0
      %v1442 = vsel %vm944, %v1436, 0
      %v1445 = vsel %vm944, %v1437, 0
      %1447 = vmatprep.subr.bf16.mxu0 %v1445
      %1448 = vmatpush1.bf16.msra.mxu0 %v1442
      %1449 = vmatprep.subr.bf16.mxu0 0
      %1450 = vmatpush1.bf16.msra.mxu0 0
      %1451 = vmatprep.subr.bf16.mxu0 0
      %1452 = vmatpush1.bf16.msra.mxu0 0
      %1453 = vmatprep.subr.bf16.mxu0 0
      %1454 = vmatpush1.bf16.msra.mxu0 0
      %1455 = vmatprep.subr.bf16.mxu0 0
      %1456 = vmatpush1.bf16.msra.mxu0 0
      %1457 = vmatprep.subr.bf16.mxu0 0
      %1458 = vmatpush1.bf16.msra.mxu0 0
      %1459 = vmatprep.subr.bf16.mxu0 0
      %1460 = vmatpush1.bf16.msra.mxu0 0
      %1461 = vmatprep.subr.bf16.mxu0 0
      %1462 = vmatpush1.bf16.msra.mxu0 0
      %1463 = vmatprep.subr.bf16.mxu0 0
      %1464 = vmatpush1.bf16.msra.mxu0 0
      %1465 = vmatprep.subr.bf16.mxu0 0
      %1466 = vmatpush1.bf16.msra.mxu0 0
      %1467 = vmatprep.subr.bf16.mxu0 0
      %1468 = vmatpush1.bf16.msra.mxu0 0
      %1469 = vmatprep.subr.bf16.mxu0 0
      %1470 = vmatpush1.bf16.msra.mxu0 0
      %1471 = vmatprep.subr.bf16.mxu0 0
      %1472 = vmatpush1.bf16.msra.mxu0 0
      %1473 = vmatprep.subr.bf16.mxu0 0
      %1474 = vmatpush1.bf16.msra.mxu0 0
      %1475 = vmatprep.subr.bf16.mxu0 0
      %1476 = vmatpush1.bf16.msra.mxu0 0
      %1477 = vmatprep.subr.bf16.mxu0 0
      %1478 = vmatpush1.bf16.msra.mxu0 0
      %1479 = vmatprep.mubr.bf16.mxu0 0
      %1480 = vmatmul.mubr.bf16.gmra.mrb[0].mxu0 %v1439
      %v1481 = vpop.f32.mrb[0].mxu0
      %v1482 = vadd.f32 0.0, %v1481
      %v1483 = vpop.f32.mrb[0].mxu0
      %v1484 = vadd.f32 0.0, %v1483
      %v1485 = vpop.f32.mrb[0].mxu0
      %v1486 = vpop.f32.mrb[0].mxu0
      %1487 = vdwg.mxu0
      %v1488 = vadd.f32 %v1382, %v1482
      %v1489 = vadd.f32 %v1383, %v1484
      %v1490 = vld [vmem:[#allocation2 + $0x6] sm:$0x1]
      %v1491 = vld [vmem:[#allocation2 + $0xe] sm:$0x1]
      %v1492 = vld [vmem:[#allocation2 + $0x16] sm:$0x1]
      %v1493 = vld [vmem:[#allocation2 + $0x1e] sm:$0x1]
      %v1494 = vld [vmem:[#allocation2 + $0x26] sm:$0x1]
      %v1500 = vrot.slane %v1491, 7
      %v1501 = vsel %vm867, %v1500, %v1490
      %v1502 = vrot.slane %v1492, 6
      %v1503 = vsel %vm870, %v1502, %v1501
      %v1504 = vrot.slane %v1493, 5
      %v1505 = vsel %vm873, %v1504, %v1503
      %v1506 = vrot.slane %v1494, 4
      %v1507 = vsel %vm876, %v1506, %v1505
      %1508 = vrot.lane.b32.xlu0 %v1507, 48
      %v1509 = vpop.permute.xlu0 %1508
      %vm1511 = vcmask 455040
      %1512 = vst.msk [vmem:[#allocation8] sm:$0x1f] %vm1511, %v1509
      %v1513 = vpack.c.bf16 %v1490, %v1490
      %v1514 = vpack.c.bf16 %v1491, %v1491
      %v1515 = vpack.c.bf16 %v1492, %v1492
      %v1516 = vpack.c.bf16 %v1493, %v1493
      %v1517 = vpack.c.bf16 %v1494, %v1494
      %s1518 = scalar_lea.vmem [#allocation6], 48
      %v1519 = vld [vmem:[%s1518] sm:$0xff]
      %v1525 = vunpack.c.l.b16 %v1513
      %v1526 = vunpack.c.l.b16 %v1514
      %v1527 = vunpack.c.l.b16 %v1515
      %v1528 = vunpack.c.l.b16 %v1516
      %v1529 = vunpack.c.l.b16 %v1517
      %v1530 = vrot.slane %v1526, 7
      %v1531 = vsel %vm867, %v1530, %v1525
      %v1532 = vrot.slane %v1527, 6
      %v1533 = vsel %vm870, %v1532, %v1531
      %v1534 = vrot.slane %v1528, 5
      %v1535 = vsel %vm873, %v1534, %v1533
      %v1536 = vrot.slane %v1529, 4
      %v1537 = vsel %vm876, %v1536, %v1535
      %v1538 = vpack.c.b16 %v1537, %v1537
      %v1540 = vunpack.c.l.b16 %v1519
      %v1541 = vunpack.c.h.b16 %v1519
      %v1542 = vpack.c.b16 %v1540, %v1540
      %v1543 = vpack.c.b16 %v1541, %v1541
      %v1545 = vsel %vm219, %v1538, 0
      %v1548 = vsel %vm944, %v1542, 0
      %v1551 = vsel %vm944, %v1543, 0
      %1553 = vmatprep.subr.bf16.mxu0 %v1551
      %1554 = vmatpush1.bf16.msra.mxu0 %v1548
      %1555 = vmatprep.subr.bf16.mxu0 0
      %1556 = vmatpush1.bf16.msra.mxu0 0
      %1557 = vmatprep.subr.bf16.mxu0 0
      %1558 = vmatpush1.bf16.msra.mxu0 0
      %1559 = vmatprep.subr.bf16.mxu0 0
      %1560 = vmatpush1.bf16.msra.mxu0 0
      %1561 = vmatprep.subr.bf16.mxu0 0
      %1562 = vmatpush1.bf16.msra.mxu0 0
      %1563 = vmatprep.subr.bf16.mxu0 0
      %1564 = vmatpush1.bf16.msra.mxu0 0
      %1565 = vmatprep.subr.bf16.mxu0 0
      %1566 = vmatpush1.bf16.msra.mxu0 0
      %1567 = vmatprep.subr.bf16.mxu0 0
      %1568 = vmatpush1.bf16.msra.mxu0 0
      %1569 = vmatprep.subr.bf16.mxu0 0
      %1570 = vmatpush1.bf16.msra.mxu0 0
      %1571 = vmatprep.subr.bf16.mxu0 0
      %1572 = vmatpush1.bf16.msra.mxu0 0
      %1573 = vmatprep.subr.bf16.mxu0 0
      %1574 = vmatpush1.bf16.msra.mxu0 0
      %1575 = vmatprep.subr.bf16.mxu0 0
      %1576 = vmatpush1.bf16.msra.mxu0 0
      %1577 = vmatprep.subr.bf16.mxu0 0
      %1578 = vmatpush1.bf16.msra.mxu0 0
      %1579 = vmatprep.subr.bf16.mxu0 0
      %1580 = vmatpush1.bf16.msra.mxu0 0
      %1581 = vmatprep.subr.bf16.mxu0 0
      %1582 = vmatpush1.bf16.msra.mxu0 0
      %1583 = vmatprep.subr.bf16.mxu0 0
      %1584 = vmatpush1.bf16.msra.mxu0 0
      %1585 = vmatprep.mubr.bf16.mxu0 0
      %1586 = vmatmul.mubr.bf16.gmra.mrb[0].mxu0 %v1545
      %v1587 = vpop.f32.mrb[0].mxu0
      %v1588 = vadd.f32 0.0, %v1587
      %v1589 = vpop.f32.mrb[0].mxu0
      %v1590 = vadd.f32 0.0, %v1589
      %v1591 = vpop.f32.mrb[0].mxu0
      %v1592 = vpop.f32.mrb[0].mxu0
      %1593 = vdwg.mxu0
      %v1594 = vadd.f32 %v1488, %v1588
      %v1595 = vadd.f32 %v1489, %v1590
      %v1596 = vld [vmem:[#allocation2 + $0x7] sm:$0x1]
      %v1597 = vld [vmem:[#allocation2 + $0xf] sm:$0x1]
      %v1598 = vld [vmem:[#allocation2 + $0x17] sm:$0x1]
      %v1599 = vld [vmem:[#allocation2 + $0x1f] sm:$0x1]
      %v1600 = vld [vmem:[#allocation2 + $0x27] sm:$0x1]
      %v1606 = vrot.slane %v1597, 7
      %v1607 = vsel %vm867, %v1606, %v1596
      %v1608 = vrot.slane %v1598, 6
      %v1609 = vsel %vm870, %v1608, %v1607
      %v1610 = vrot.slane %v1599, 5
      %v1611 = vsel %vm873, %v1610, %v1609
      %v1612 = vrot.slane %v1600, 4
      %v1613 = vsel %vm876, %v1612, %v1611
      %1614 = vrot.lane.b32.xlu0 %v1613, 56
      %v1615 = vpop.permute.xlu0 %1614
      %vm1617 = vcmask 520640
      %1618 = vst.msk [vmem:[#allocation8] sm:$0x1f] %vm1617, %v1615
      %v1619 = vpack.c.bf16 %v1596, %v1596
      %v1620 = vpack.c.bf16 %v1597, %v1597
      %v1621 = vpack.c.bf16 %v1598, %v1598
      %v1622 = vpack.c.bf16 %v1599, %v1599
      %v1623 = vpack.c.bf16 %v1600, %v1600
      %s1624 = scalar_lea.vmem [#allocation6], 56
      %v1625 = vld [vmem:[%s1624] sm:$0xff]
      %v1631 = vunpack.c.l.b16 %v1619
      %v1632 = vunpack.c.l.b16 %v1620
      %v1633 = vunpack.c.l.b16 %v1621
      %v1634 = vunpack.c.l.b16 %v1622
      %v1635 = vunpack.c.l.b16 %v1623
      %v1636 = vrot.slane %v1632, 7
      %v1637 = vsel %vm867, %v1636, %v1631
      %v1638 = vrot.slane %v1633, 6
      %v1639 = vsel %vm870, %v1638, %v1637
      %v1640 = vrot.slane %v1634, 5
      %v1641 = vsel %vm873, %v1640, %v1639
      %v1642 = vrot.slane %v1635, 4
      %v1643 = vsel %vm876, %v1642, %v1641
      %v1644 = vpack.c.b16 %v1643, %v1643
      %v1646 = vunpack.c.l.b16 %v1625
      %v1647 = vunpack.c.h.b16 %v1625
      %v1648 = vpack.c.b16 %v1646, %v1646
      %v1649 = vpack.c.b16 %v1647, %v1647
      %v1651 = vsel %vm219, %v1644, 0
      %v1654 = vsel %vm944, %v1648, 0
      %v1657 = vsel %vm944, %v1649, 0
      %1659 = vmatprep.subr.bf16.mxu0 %v1657
      %1660 = vmatpush1.bf16.msra.mxu0 %v1654
      %1661 = vmatprep.subr.bf16.mxu0 0
      %1662 = vmatpush1.bf16.msra.mxu0 0
      %1663 = vmatprep.subr.bf16.mxu0 0
      %1664 = vmatpush1.bf16.msra.mxu0 0
      %1665 = vmatprep.subr.bf16.mxu0 0
      %1666 = vmatpush1.bf16.msra.mxu0 0
      %1667 = vmatprep.subr.bf16.mxu0 0
      %1668 = vmatpush1.bf16.msra.mxu0 0
      %1669 = vmatprep.subr.bf16.mxu0 0
      %1670 = vmatpush1.bf16.msra.mxu0 0
      %1671 = vmatprep.subr.bf16.mxu0 0
      %1672 = vmatpush1.bf16.msra.mxu0 0
      %1673 = vmatprep.subr.bf16.mxu0 0
      %1674 = vmatpush1.bf16.msra.mxu0 0
      %1675 = vmatprep.subr.bf16.mxu0 0
      %1676 = vmatpush1.bf16.msra.mxu0 0
      %1677 = vmatprep.subr.bf16.mxu0 0
      %1678 = vmatpush1.bf16.msra.mxu0 0
      %1679 = vmatprep.subr.bf16.mxu0 0
      %1680 = vmatpush1.bf16.msra.mxu0 0
      %1681 = vmatprep.subr.bf16.mxu0 0
      %1682 = vmatpush1.bf16.msra.mxu0 0
      %1683 = vmatprep.subr.bf16.mxu0 0
      %1684 = vmatpush1.bf16.msra.mxu0 0
      %1685 = vmatprep.subr.bf16.mxu0 0
      %1686 = vmatpush1.bf16.msra.mxu0 0
      %1687 = vmatprep.subr.bf16.mxu0 0
      %1688 = vmatpush1.bf16.msra.mxu0 0
      %1689 = vmatprep.subr.bf16.mxu0 0
      %1690 = vmatpush1.bf16.msra.mxu0 0
      %1691 = vmatprep.mubr.bf16.mxu0 0
      %1692 = vmatmul.mubr.bf16.gmra.mrb[0].mxu0 %v1651
      %v1693 = vpop.f32.mrb[0].mxu0
      %v1694 = vadd.f32 0.0, %v1693
      %v1695 = vpop.f32.mrb[0].mxu0
      %v1696 = vadd.f32 0.0, %v1695
      %v1697 = vpop.f32.mrb[0].mxu0
      %v1698 = vpop.f32.mrb[0].mxu0
      %1699 = vdwg.mxu0
      %v1700 = vadd.f32 %v1594, %v1694
      %v1701 = vadd.f32 %v1595, %v1696
      %1704 = vrot.lane.b32.xlu0 %v1700, 64
      %v1705 = vpop.permute.xlu0 %1704
      %1706 = vrot.lane.b32.xlu0 %v1701, 64
      %v1707 = vpop.permute.xlu0 %1706
      %vm1708 = vcmask 523264
      %v1709 = vsel %vm1708, %v1705, %v1707
      %vm1712 = vcmask 1044992
      %1713 = vst.msk [vmem:[#allocation8] sm:$0x1f] %vm1712, %v1705
      %1714 = vst [vmem:[#allocation8 + $0x8] sm:$0x1f] %v1709
    $region33: #{tpu_custom_call.1} parent=1 // pred_fallthru
      _
    // Predicated region
    $region34: #{tpu_custom_call.1} parent=1 // pred_check
      _
    $region35: #{tpu_custom_call.1} parent=1 // pred_check_branch
      %1716 = sbr.rel (0) target = $region37
    $region36: #{tpu_custom_call.1} parent=1 // pred_region
      %s1718 = ssub.s32 256, 256
      %1719 = vsyncadd [#allocation5], %s1718
      %s1721 = sshll.u32 [#allocation8], 4
      %s1722 = int_to_ptr.vmem [resolvable:$true] %s1721
      %1724 = dma.vmem_to_hbm [thread:$0]  %s1722, 256, %s4, [#allocation5]
    $region37: #{tpu_custom_call.1} parent=1 // pred_fallthru
      _
    // Predicated region
    $region38: #{tpu_custom_call.1} parent=1 // pred_check
      _
    $region39: #{tpu_custom_call.1} parent=1 // pred_check_branch
      %1726 = sbr.rel (0) target = $region41
    $region40: #{tpu_custom_call.1} parent=1 // pred_region
      %1727 = dma.done [#allocation5], 256
    $region41: #{tpu_custom_call.1} parent=1 // pred_fallthru
      _
    %1728 = vsyncpa [#allocation4], 1
    %1729 = vsyncpa [#allocation7], 1
    %1730 = vsyncpa [#allocation5], 1

</llo_original>
